<compile_context>
chip_gen: v7x
topology: tpu7x:2x2x1
jax: 0.10.0
libtpu: 0.0.40
codegen_flags: <defaults>
</compile_context>

<pallas_src>
import jax
import jax.numpy as jnp
import numpy as np
from jax import lax
from jax.experimental import pallas as pl
from jax.experimental.pallas import tpu as pltpu

H_IN = 22          # conv2 kernel height -> output height 1
C_OUT = 40
POOL_K = 75
POOL_S = 15


# ----------------------------------------------------------------------------
# Fused kernel: in-VMEM im2col -> (folded conv1*conv2 matmul) -> ^2 -> pool matmul -> log
# Grid iterates over batch tiles of `bt` samples; the batch tile is lane-stacked.
# ----------------------------------------------------------------------------
def _make_kernel(bt, ksize, w_in):
    def kernel(xpad_ref, weff_ref, beff_ref, pmat_ref, out_ref, patches_ref):
        # xpad_ref   : (bt, 22, Wp)        padded raw input, Wp = W + ksize - 1
        # weff_ref   : (40, 22*ksize)      folded conv1*conv2 weight, row index = j*22 + h
        # beff_ref   : (40, 1)             folded bias
        # pmat_ref   : (bt*W, bt*P)        block-diagonal average-pooling matrix
        # out_ref    : (1, 40, bt*P)       log(pool(conv^2)) for this batch tile (lane-stacked)
        # patches_ref: (22*ksize, bt*W)    VMEM scratch, filled in-kernel (no HBM im2col)

        # 1) in-VMEM im2col: patches[j*22 + h, b*W + w] = xpad[b, h, w + j]
        #    static unrolled loop of lane-shifted slice copies (bt, ksize are Python ints)
        for b in range(bt):
            for j in range(ksize):
                patches_ref[j * H_IN:(j + 1) * H_IN, b * w_in:(b + 1) * w_in] = (
                    xpad_ref[b, :, j:j + w_in])

        # 2) all of conv1+conv2 as ONE MXU matmul over the whole lane-stacked batch tile
        conv = jnp.dot(weff_ref[...], patches_ref[...],
                       preferred_element_type=jnp.float32) + beff_ref[...]   # (40, bt*W)

        # 3) torch.pow(out, 2)  (lane-dense VPU work)
        sq = conv * conv

        # 4) AvgPool2d((1,75), stride (1,15)) as a matmul against the block-diagonal
        #    pooling matrix (runs on the otherwise idle MXU), then log.
        pooled = jnp.dot(sq, pmat_ref[...],
                         preferred_element_type=jnp.float32)                 # (40, bt*P)
        out_ref[0] = jnp.log(pooled)

    return kernel


# ----------------------------------------------------------------------------
# Wrapper-side weight folding / pooling matrix / tiling helpers
# ----------------------------------------------------------------------------
def _fold_weights(w1, b1, w2, b2, ksize):
    """Fold conv1(1xK,'same', 1->40) followed by conv2(22x1, 40->40) into one weight over
    the (tap-major, height-minor) patch layout:  weff[o, j*22 + h], beff[o]."""
    w1m = w1.reshape(C_OUT, ksize)                               # (c_mid, tap)
    w2m = jnp.transpose(w2[:, :, :, 0], (2, 0, 1))               # (h, c_out, c_in)
    weff = jnp.einsum("hoc,cj->ojh", w2m, w1m,
                      precision=lax.Precision.HIGHEST)           # (c_out, tap, h)
    weff = weff.reshape(C_OUT, ksize * H_IN)                     # row index j*22 + h
    beff = b2 + jnp.einsum("hoc,c->o", w2m, b1, precision=lax.Precision.HIGHEST)
    return weff, beff.reshape(C_OUT, 1)


def _pool_matrix(bt, w_in, n_pool):
    """Block-diagonal (bt*W, bt*P) average-pooling matrix for the lane-stacked batch tile."""
    base = np.zeros((w_in, n_pool), np.float32)
    for p in range(n_pool):
        base[POOL_S * p: POOL_S * p + POOL_K, p] = 1.0 / POOL_K
    m = np.zeros((bt * w_in, bt * n_pool), np.float32)
    for b in range(bt):
        m[b * w_in:(b + 1) * w_in, b * n_pool:(b + 1) * n_pool] = base
    return jnp.asarray(m)


def _pick_batch_tile(n):
    # Tiny batches: a single grid step (extra steps on a 1-TC chip are pure per-step
    # overhead for latency-bound inference).  Larger batches: tile by 8 so the grid can
    # be split across v7x's two TensorCores while staying well inside 64 MiB VMEM.
    return min(n, 8)


def _vmem_limit_bytes(bt, ksize, w_in, wp, n_pool):
    """Scoped-VMEM budget from the actual (padded) block sizes, capped under v7x's 64 MiB."""
    def rup(x, m):
        return -(-x // m) * m
    hk = H_IN * ksize
    f32 = 4
    xblk = bt * rup(H_IN, 8) * rup(wp, 128) * f32
    wblk = rup(C_OUT, 8) * rup(hk, 128) * f32
    bblk = rup(C_OUT, 8) * 128 * f32
    pblk = rup(bt * w_in, 8) * rup(bt * n_pool, 128) * f32
    oblk = rup(C_OUT, 8) * rup(bt * n_pool, 128) * f32
    scratch = rup(hk, 8) * rup(bt * w_in, 128) * f32
    temps = 3 * rup(C_OUT, 8) * rup(bt * w_in, 128) * f32
    est = 2 * (xblk + wblk + bblk + pblk + oblk) + scratch + temps   # inputs double-buffered
    return int(min(max(2 * est, 16 << 20), 56 << 20))


# ----------------------------------------------------------------------------
# Forward (matches SimpleNet_v3.forward semantics)
# ----------------------------------------------------------------------------
def simplenet_forward(x, params, *, ksize):
    w1, b1, w2, b2 = params
    n, c_in, h, w_in = x.shape
    assert c_in == 1 and h == H_IN
    pad = (ksize - 1) // 2
    wp = w_in + 2 * pad
    n_pool = (w_in - POOL_K) // POOL_S + 1
    hk = H_IN * ksize

    bt = _pick_batch_tile(n)
    n_tiles = -(-n // bt)
    n_pad = n_tiles * bt
    if n_pad != n:                                              # pad batch with copies of last sample
        extra = jnp.broadcast_to(x[-1:], (n_pad - n,) + x.shape[1:])
        x = jnp.concatenate([x, extra], axis=0)

    xpad = jnp.pad(x[:, 0], ((0, 0), (0, 0), (pad, pad)))       # (n_pad, 22, Wp) -- raw input only
    weff, beff = _fold_weights(w1, b1, w2, b2, ksize)
    pmat = _pool_matrix(bt, w_in, n_pool)

    out = pl.pallas_call(
        _make_kernel(bt, ksize, w_in),
        out_shape=jax.ShapeDtypeStruct((n_tiles, C_OUT, bt * n_pool), jnp.float32),
        grid_spec=pltpu.PrefetchScalarGridSpec(
            num_scalar_prefetch=0,
            grid=(n_tiles,),
            in_specs=[
                pl.BlockSpec((bt, H_IN, wp), lambda i: (i, 0, 0)),
                pl.BlockSpec((C_OUT, hk), lambda i: (0, 0)),
                pl.BlockSpec((C_OUT, 1), lambda i: (0, 0)),
                pl.BlockSpec((bt * w_in, bt * n_pool), lambda i: (0, 0)),
            ],
            out_specs=pl.BlockSpec((1, C_OUT, bt * n_pool), lambda i: (i, 0, 0)),
            scratch_shapes=[pltpu.VMEM((hk, bt * w_in), jnp.float32)],
        ),
        compiler_params=pltpu.CompilerParams(
            dimension_semantics=("parallel",),
            vmem_limit_bytes=_vmem_limit_bytes(bt, ksize, w_in, wp, n_pool),
        ),
    )(xpad, weff, beff, pmat)

    # un-lane-stack: (n_tiles, 40, bt*P) -> (N, 40, 1, P)
    out = out.reshape(n_tiles, C_OUT, bt, n_pool)
    out = jnp.transpose(out, (0, 2, 1, 3)).reshape(n_pad, C_OUT, 1, n_pool)
    return out[:n]


# ----------------------------------------------------------------------------
# Pure-JAX reference (matches the PyTorch forward, HIGHEST precision)
# ----------------------------------------------------------------------------
def simplenet_reference(x, params, ksize):
    w1, b1, w2, b2 = params
    pad = (ksize - 1) // 2
    dn = ("NCHW", "OIHW", "NCHW")
    y = lax.conv_general_dilated(x, w1, (1, 1), ((0, 0), (pad, pad)),
                                 dimension_numbers=dn, precision=lax.Precision.HIGHEST)
    y = y + b1[None, :, None, None]
    y = lax.conv_general_dilated(y, w2, (1, 1), ((0, 0), (0, 0)),
                                 dimension_numbers=dn, precision=lax.Precision.HIGHEST)
    y = y + b2[None, :, None, None]
    y = y * y
    y = lax.reduce_window(y, 0.0, lax.add,
                          (1, 1, 1, POOL_K), (1, 1, 1, POOL_S), "VALID") / POOL_K
    return jnp.log(y)                                           # (N, 40, 1, P)


# ----------------------------------------------------------------------------
# Main
# ----------------------------------------------------------------------------
if __name__ == "__main__":
    KSIZE = 15                       # nn.Conv2d(1, 40, (1, ksize), padding=(0,(ksize-1)//2))
    N, W = 2, 120                    # width 120 -> pool output width (120-75)//15 + 1 = 4

    key = jax.random.PRNGKey(0)
    k1, k2, k3, k4, kx = jax.random.split(key, 5)

    def norm(k, shape, scale=0.05):
        return scale * jax.random.normal(k, shape, dtype=jnp.float32)

    params = (
        norm(k1, (C_OUT, 1, 1, KSIZE)),          # conv1 weight
        norm(k2, (C_OUT,)),                      # conv1 bias
        norm(k3, (C_OUT, C_OUT, H_IN, 1)),       # conv2 weight
        norm(k4, (C_OUT,)),                      # conv2 bias
    )
    x = jax.random.normal(kx, (N, 1, H_IN, W), dtype=jnp.float32)

    fwd = jax.jit(simplenet_forward, static_argnames=("ksize",))
    out = jax.block_until_ready(fwd(x, params, ksize=KSIZE))

    n_pool = (W - POOL_K) // POOL_S + 1
    assert out.shape == (N, C_OUT, 1, n_pool) and out.dtype == jnp.float32

    ref = jax.block_until_ready(simplenet_reference(x, params, KSIZE))
    np.testing.assert_allclose(np.asarray(out), np.asarray(ref), rtol=5e-2, atol=5e-2)

    print("KERNEL_OK")
</pallas_src>

<mosaic_0001>
module attributes {stable_mosaic.version = 11 : i64} {
  func.func @kernel(%arg0: i32, %arg1: memref<2x22x134xf32, #tpu.memory_space<vmem>>, %arg2: memref<40x330xf32, #tpu.memory_space<vmem>>, %arg3: memref<40x1xf32, #tpu.memory_space<vmem>>, %arg4: memref<240x8xf32, #tpu.memory_space<vmem>>, %arg5: memref<1x40x8xf32, #tpu.memory_space<vmem>>, %arg6: memref<330x240xf32, #tpu.memory_space<vmem>>) attributes {dimension_semantics = [#tpu.dimension_semantics<parallel>], iteration_bounds = array<i64: 1>, scalar_prefetch = 0 : i64, scratch_operands = 1 : i64, tpu.core_type = #tpu.core_type<tc>, window_params = [{transform_indices = @transform_0, window_bounds = array<i64: 2, 22, 134>}, {pipeline_mode = #tpu.pipeline_mode<synchronous>, transform_indices = @transform_1, window_bounds = array<i64: 40, 330>}, {pipeline_mode = #tpu.pipeline_mode<synchronous>, transform_indices = @transform_2, window_bounds = array<i64: 40, 1>}, {pipeline_mode = #tpu.pipeline_mode<synchronous>, transform_indices = @transform_3, window_bounds = array<i64: 240, 8>}, {transform_indices = @transform_4, window_bounds = array<i64: 1, 40, 8>}]} {
    %c0 = arith.constant 0 : index
    %c0_0 = arith.constant 0 : index
    %c0_1 = arith.constant 0 : index
    %0 = vector.load %arg1[%c0, %c0_0, %c0_1] : memref<2x22x134xf32, #tpu.memory_space<vmem>>, vector<1x22x120xf32>
    %1 = vector.shape_cast %0 : vector<1x22x120xf32> to vector<22x120xf32>
    %c0_2 = arith.constant 0 : index
    %c0_3 = arith.constant 0 : index
    %2 = vector.load %arg6[%c0_2, %c0_3] : memref<330x240xf32, #tpu.memory_space<vmem>>, vector<22x120xf32>
    tpu.vector_store %arg6[%c0_2, %c0_3], %1 {strides = array<i32>} : memref<330x240xf32, #tpu.memory_space<vmem>>, vector<22x120xf32>,
    %c0_4 = arith.constant 0 : index
    %c0_5 = arith.constant 0 : index
    %c1 = arith.constant 1 : index
    %3 = vector.load %arg1[%c0_4, %c0_5, %c1] : memref<2x22x134xf32, #tpu.memory_space<vmem>>, vector<1x22x120xf32>
    %4 = vector.shape_cast %3 : vector<1x22x120xf32> to vector<22x120xf32>
    %c22 = arith.constant 22 : index
    %c0_6 = arith.constant 0 : index
    %5 = vector.load %arg6[%c22, %c0_6] : memref<330x240xf32, #tpu.memory_space<vmem>>, vector<22x120xf32>
    tpu.vector_store %arg6[%c22, %c0_6], %4 {strides = array<i32>} : memref<330x240xf32, #tpu.memory_space<vmem>>, vector<22x120xf32>,
    %c0_7 = arith.constant 0 : index
    %c0_8 = arith.constant 0 : index
    %c2 = arith.constant 2 : index
    %6 = vector.load %arg1[%c0_7, %c0_8, %c2] : memref<2x22x134xf32, #tpu.memory_space<vmem>>, vector<1x22x120xf32>
    %7 = vector.shape_cast %6 : vector<1x22x120xf32> to vector<22x120xf32>
    %c44 = arith.constant 44 : index
    %c0_9 = arith.constant 0 : index
    %8 = vector.load %arg6[%c44, %c0_9] : memref<330x240xf32, #tpu.memory_space<vmem>>, vector<22x120xf32>
    tpu.vector_store %arg6[%c44, %c0_9], %7 {strides = array<i32>} : memref<330x240xf32, #tpu.memory_space<vmem>>, vector<22x120xf32>,
    %c0_10 = arith.constant 0 : index
    %c0_11 = arith.constant 0 : index
    %c3 = arith.constant 3 : index
    %9 = vector.load %arg1[%c0_10, %c0_11, %c3] : memref<2x22x134xf32, #tpu.memory_space<vmem>>, vector<1x22x120xf32>
    %10 = vector.shape_cast %9 : vector<1x22x120xf32> to vector<22x120xf32>
    %c66 = arith.constant 66 : index
    %c0_12 = arith.constant 0 : index
    %11 = vector.load %arg6[%c66, %c0_12] : memref<330x240xf32, #tpu.memory_space<vmem>>, vector<22x120xf32>
    tpu.vector_store %arg6[%c66, %c0_12], %10 {strides = array<i32>} : memref<330x240xf32, #tpu.memory_space<vmem>>, vector<22x120xf32>,
    %c0_13 = arith.constant 0 : index
    %c0_14 = arith.constant 0 : index
    %c4 = arith.constant 4 : index
    %12 = vector.load %arg1[%c0_13, %c0_14, %c4] : memref<2x22x134xf32, #tpu.memory_space<vmem>>, vector<1x22x120xf32>
    %13 = vector.shape_cast %12 : vector<1x22x120xf32> to vector<22x120xf32>
    %c88 = arith.constant 88 : index
    %c0_15 = arith.constant 0 : index
    %14 = vector.load %arg6[%c88, %c0_15] : memref<330x240xf32, #tpu.memory_space<vmem>>, vector<22x120xf32>
    tpu.vector_store %arg6[%c88, %c0_15], %13 {strides = array<i32>} : memref<330x240xf32, #tpu.memory_space<vmem>>, vector<22x120xf32>,
    %c0_16 = arith.constant 0 : index
    %c0_17 = arith.constant 0 : index
    %c5 = arith.constant 5 : index
    %15 = vector.load %arg1[%c0_16, %c0_17, %c5] : memref<2x22x134xf32, #tpu.memory_space<vmem>>, vector<1x22x120xf32>
    %16 = vector.shape_cast %15 : vector<1x22x120xf32> to vector<22x120xf32>
    %c110 = arith.constant 110 : index
    %c0_18 = arith.constant 0 : index
    %17 = vector.load %arg6[%c110, %c0_18] : memref<330x240xf32, #tpu.memory_space<vmem>>, vector<22x120xf32>
    tpu.vector_store %arg6[%c110, %c0_18], %16 {strides = array<i32>} : memref<330x240xf32, #tpu.memory_space<vmem>>, vector<22x120xf32>,
    %c0_19 = arith.constant 0 : index
    %c0_20 = arith.constant 0 : index
    %c6 = arith.constant 6 : index
    %18 = vector.load %arg1[%c0_19, %c0_20, %c6] : memref<2x22x134xf32, #tpu.memory_space<vmem>>, vector<1x22x120xf32>
    %19 = vector.shape_cast %18 : vector<1x22x120xf32> to vector<22x120xf32>
    %c132 = arith.constant 132 : index
    %c0_21 = arith.constant 0 : index
    %20 = vector.load %arg6[%c132, %c0_21] : memref<330x240xf32, #tpu.memory_space<vmem>>, vector<22x120xf32>
    tpu.vector_store %arg6[%c132, %c0_21], %19 {strides = array<i32>} : memref<330x240xf32, #tpu.memory_space<vmem>>, vector<22x120xf32>,
    %c0_22 = arith.constant 0 : index
    %c0_23 = arith.constant 0 : index
    %c7 = arith.constant 7 : index
    %21 = vector.load %arg1[%c0_22, %c0_23, %c7] : memref<2x22x134xf32, #tpu.memory_space<vmem>>, vector<1x22x120xf32>
    %22 = vector.shape_cast %21 : vector<1x22x120xf32> to vector<22x120xf32>
    %c154 = arith.constant 154 : index
    %c0_24 = arith.constant 0 : index
    %23 = vector.load %arg6[%c154, %c0_24] : memref<330x240xf32, #tpu.memory_space<vmem>>, vector<22x120xf32>
    tpu.vector_store %arg6[%c154, %c0_24], %22 {strides = array<i32>} : memref<330x240xf32, #tpu.memory_space<vmem>>, vector<22x120xf32>,
    %c0_25 = arith.constant 0 : index
    %c0_26 = arith.constant 0 : index
    %c8 = arith.constant 8 : index
    %24 = vector.load %arg1[%c0_25, %c0_26, %c8] : memref<2x22x134xf32, #tpu.memory_space<vmem>>, vector<1x22x120xf32>
    %25 = vector.shape_cast %24 : vector<1x22x120xf32> to vector<22x120xf32>
    %c176 = arith.constant 176 : index
    %c0_27 = arith.constant 0 : index
    %26 = vector.load %arg6[%c176, %c0_27] : memref<330x240xf32, #tpu.memory_space<vmem>>, vector<22x120xf32>
    tpu.vector_store %arg6[%c176, %c0_27], %25 {strides = array<i32>} : memref<330x240xf32, #tpu.memory_space<vmem>>, vector<22x120xf32>,
    %c0_28 = arith.constant 0 : index
    %c0_29 = arith.constant 0 : index
    %c9 = arith.constant 9 : index
    %27 = vector.load %arg1[%c0_28, %c0_29, %c9] : memref<2x22x134xf32, #tpu.memory_space<vmem>>, vector<1x22x120xf32>
    %28 = vector.shape_cast %27 : vector<1x22x120xf32> to vector<22x120xf32>
    %c198 = arith.constant 198 : index
    %c0_30 = arith.constant 0 : index
    %29 = vector.load %arg6[%c198, %c0_30] : memref<330x240xf32, #tpu.memory_space<vmem>>, vector<22x120xf32>
    tpu.vector_store %arg6[%c198, %c0_30], %28 {strides = array<i32>} : memref<330x240xf32, #tpu.memory_space<vmem>>, vector<22x120xf32>,
    %c0_31 = arith.constant 0 : index
    %c0_32 = arith.constant 0 : index
    %c10 = arith.constant 10 : index
    %30 = vector.load %arg1[%c0_31, %c0_32, %c10] : memref<2x22x134xf32, #tpu.memory_space<vmem>>, vector<1x22x120xf32>
    %31 = vector.shape_cast %30 : vector<1x22x120xf32> to vector<22x120xf32>
    %c220 = arith.constant 220 : index
    %c0_33 = arith.constant 0 : index
    %32 = vector.load %arg6[%c220, %c0_33] : memref<330x240xf32, #tpu.memory_space<vmem>>, vector<22x120xf32>
    tpu.vector_store %arg6[%c220, %c0_33], %31 {strides = array<i32>} : memref<330x240xf32, #tpu.memory_space<vmem>>, vector<22x120xf32>,
    %c0_34 = arith.constant 0 : index
    %c0_35 = arith.constant 0 : index
    %c11 = arith.constant 11 : index
    %33 = vector.load %arg1[%c0_34, %c0_35, %c11] : memref<2x22x134xf32, #tpu.memory_space<vmem>>, vector<1x22x120xf32>
    %34 = vector.shape_cast %33 : vector<1x22x120xf32> to vector<22x120xf32>
    %c242 = arith.constant 242 : index
    %c0_36 = arith.constant 0 : index
    %35 = vector.load %arg6[%c242, %c0_36] : memref<330x240xf32, #tpu.memory_space<vmem>>, vector<22x120xf32>
    tpu.vector_store %arg6[%c242, %c0_36], %34 {strides = array<i32>} : memref<330x240xf32, #tpu.memory_space<vmem>>, vector<22x120xf32>,
    %c0_37 = arith.constant 0 : index
    %c0_38 = arith.constant 0 : index
    %c12 = arith.constant 12 : index
    %36 = vector.load %arg1[%c0_37, %c0_38, %c12] : memref<2x22x134xf32, #tpu.memory_space<vmem>>, vector<1x22x120xf32>
    %37 = vector.shape_cast %36 : vector<1x22x120xf32> to vector<22x120xf32>
    %c264 = arith.constant 264 : index
    %c0_39 = arith.constant 0 : index
    %38 = vector.load %arg6[%c264, %c0_39] : memref<330x240xf32, #tpu.memory_space<vmem>>, vector<22x120xf32>
    tpu.vector_store %arg6[%c264, %c0_39], %37 {strides = array<i32>} : memref<330x240xf32, #tpu.memory_space<vmem>>, vector<22x120xf32>,
    %c0_40 = arith.constant 0 : index
    %c0_41 = arith.constant 0 : index
    %c13 = arith.constant 13 : index
    %39 = vector.load %arg1[%c0_40, %c0_41, %c13] : memref<2x22x134xf32, #tpu.memory_space<vmem>>, vector<1x22x120xf32>
    %40 = vector.shape_cast %39 : vector<1x22x120xf32> to vector<22x120xf32>
    %c286 = arith.constant 286 : index
    %c0_42 = arith.constant 0 : index
    %41 = vector.load %arg6[%c286, %c0_42] : memref<330x240xf32, #tpu.memory_space<vmem>>, vector<22x120xf32>
    tpu.vector_store %arg6[%c286, %c0_42], %40 {strides = array<i32>} : memref<330x240xf32, #tpu.memory_space<vmem>>, vector<22x120xf32>,
    %c0_43 = arith.constant 0 : index
    %c0_44 = arith.constant 0 : index
    %c14 = arith.constant 14 : index
    %42 = vector.load %arg1[%c0_43, %c0_44, %c14] : memref<2x22x134xf32, #tpu.memory_space<vmem>>, vector<1x22x120xf32>
    %43 = vector.shape_cast %42 : vector<1x22x120xf32> to vector<22x120xf32>
    %c308 = arith.constant 308 : index
    %c0_45 = arith.constant 0 : index
    %44 = vector.load %arg6[%c308, %c0_45] : memref<330x240xf32, #tpu.memory_space<vmem>>, vector<22x120xf32>
    tpu.vector_store %arg6[%c308, %c0_45], %43 {strides = array<i32>} : memref<330x240xf32, #tpu.memory_space<vmem>>, vector<22x120xf32>,
    %c1_46 = arith.constant 1 : index
    %c0_47 = arith.constant 0 : index
    %c0_48 = arith.constant 0 : index
    %45 = vector.load %arg1[%c1_46, %c0_47, %c0_48] : memref<2x22x134xf32, #tpu.memory_space<vmem>>, vector<1x22x120xf32>
    %46 = vector.shape_cast %45 : vector<1x22x120xf32> to vector<22x120xf32>
    %c0_49 = arith.constant 0 : index
    %c120 = arith.constant 120 : index
    %47 = vector.load %arg6[%c0_49, %c120] : memref<330x240xf32, #tpu.memory_space<vmem>>, vector<22x120xf32>
    tpu.vector_store %arg6[%c0_49, %c120], %46 {strides = array<i32>} : memref<330x240xf32, #tpu.memory_space<vmem>>, vector<22x120xf32>,
    %c1_50 = arith.constant 1 : index
    %c0_51 = arith.constant 0 : index
    %c1_52 = arith.constant 1 : index
    %48 = vector.load %arg1[%c1_50, %c0_51, %c1_52] : memref<2x22x134xf32, #tpu.memory_space<vmem>>, vector<1x22x120xf32>
    %49 = vector.shape_cast %48 : vector<1x22x120xf32> to vector<22x120xf32>
    %c22_53 = arith.constant 22 : index
    %c120_54 = arith.constant 120 : index
    %50 = vector.load %arg6[%c22_53, %c120_54] : memref<330x240xf32, #tpu.memory_space<vmem>>, vector<22x120xf32>
    tpu.vector_store %arg6[%c22_53, %c120_54], %49 {strides = array<i32>} : memref<330x240xf32, #tpu.memory_space<vmem>>, vector<22x120xf32>,
    %c1_55 = arith.constant 1 : index
    %c0_56 = arith.constant 0 : index
    %c2_57 = arith.constant 2 : index
    %51 = vector.load %arg1[%c1_55, %c0_56, %c2_57] : memref<2x22x134xf32, #tpu.memory_space<vmem>>, vector<1x22x120xf32>
    %52 = vector.shape_cast %51 : vector<1x22x120xf32> to vector<22x120xf32>
    %c44_58 = arith.constant 44 : index
    %c120_59 = arith.constant 120 : index
    %53 = vector.load %arg6[%c44_58, %c120_59] : memref<330x240xf32, #tpu.memory_space<vmem>>, vector<22x120xf32>
    tpu.vector_store %arg6[%c44_58, %c120_59], %52 {strides = array<i32>} : memref<330x240xf32, #tpu.memory_space<vmem>>, vector<22x120xf32>,
    %c1_60 = arith.constant 1 : index
    %c0_61 = arith.constant 0 : index
    %c3_62 = arith.constant 3 : index
    %54 = vector.load %arg1[%c1_60, %c0_61, %c3_62] : memref<2x22x134xf32, #tpu.memory_space<vmem>>, vector<1x22x120xf32>
    %55 = vector.shape_cast %54 : vector<1x22x120xf32> to vector<22x120xf32>
    %c66_63 = arith.constant 66 : index
    %c120_64 = arith.constant 120 : index
    %56 = vector.load %arg6[%c66_63, %c120_64] : memref<330x240xf32, #tpu.memory_space<vmem>>, vector<22x120xf32>
    tpu.vector_store %arg6[%c66_63, %c120_64], %55 {strides = array<i32>} : memref<330x240xf32, #tpu.memory_space<vmem>>, vector<22x120xf32>,
    %c1_65 = arith.constant 1 : index
    %c0_66 = arith.constant 0 : index
    %c4_67 = arith.constant 4 : index
    %57 = vector.load %arg1[%c1_65, %c0_66, %c4_67] : memref<2x22x134xf32, #tpu.memory_space<vmem>>, vector<1x22x120xf32>
    %58 = vector.shape_cast %57 : vector<1x22x120xf32> to vector<22x120xf32>
    %c88_68 = arith.constant 88 : index
    %c120_69 = arith.constant 120 : index
    %59 = vector.load %arg6[%c88_68, %c120_69] : memref<330x240xf32, #tpu.memory_space<vmem>>, vector<22x120xf32>
    tpu.vector_store %arg6[%c88_68, %c120_69], %58 {strides = array<i32>} : memref<330x240xf32, #tpu.memory_space<vmem>>, vector<22x120xf32>,
    %c1_70 = arith.constant 1 : index
    %c0_71 = arith.constant 0 : index
    %c5_72 = arith.constant 5 : index
    %60 = vector.load %arg1[%c1_70, %c0_71, %c5_72] : memref<2x22x134xf32, #tpu.memory_space<vmem>>, vector<1x22x120xf32>
    %61 = vector.shape_cast %60 : vector<1x22x120xf32> to vector<22x120xf32>
    %c110_73 = arith.constant 110 : index
    %c120_74 = arith.constant 120 : index
    %62 = vector.load %arg6[%c110_73, %c120_74] : memref<330x240xf32, #tpu.memory_space<vmem>>, vector<22x120xf32>
    tpu.vector_store %arg6[%c110_73, %c120_74], %61 {strides = array<i32>} : memref<330x240xf32, #tpu.memory_space<vmem>>, vector<22x120xf32>,
    %c1_75 = arith.constant 1 : index
    %c0_76 = arith.constant 0 : index
    %c6_77 = arith.constant 6 : index
    %63 = vector.load %arg1[%c1_75, %c0_76, %c6_77] : memref<2x22x134xf32, #tpu.memory_space<vmem>>, vector<1x22x120xf32>
    %64 = vector.shape_cast %63 : vector<1x22x120xf32> to vector<22x120xf32>
    %c132_78 = arith.constant 132 : index
    %c120_79 = arith.constant 120 : index
    %65 = vector.load %arg6[%c132_78, %c120_79] : memref<330x240xf32, #tpu.memory_space<vmem>>, vector<22x120xf32>
    tpu.vector_store %arg6[%c132_78, %c120_79], %64 {strides = array<i32>} : memref<330x240xf32, #tpu.memory_space<vmem>>, vector<22x120xf32>,
    %c1_80 = arith.constant 1 : index
    %c0_81 = arith.constant 0 : index
    %c7_82 = arith.constant 7 : index
    %66 = vector.load %arg1[%c1_80, %c0_81, %c7_82] : memref<2x22x134xf32, #tpu.memory_space<vmem>>, vector<1x22x120xf32>
    %67 = vector.shape_cast %66 : vector<1x22x120xf32> to vector<22x120xf32>
    %c154_83 = arith.constant 154 : index
    %c120_84 = arith.constant 120 : index
    %68 = vector.load %arg6[%c154_83, %c120_84] : memref<330x240xf32, #tpu.memory_space<vmem>>, vector<22x120xf32>
    tpu.vector_store %arg6[%c154_83, %c120_84], %67 {strides = array<i32>} : memref<330x240xf32, #tpu.memory_space<vmem>>, vector<22x120xf32>,
    %c1_85 = arith.constant 1 : index
    %c0_86 = arith.constant 0 : index
    %c8_87 = arith.constant 8 : index
    %69 = vector.load %arg1[%c1_85, %c0_86, %c8_87] : memref<2x22x134xf32, #tpu.memory_space<vmem>>, vector<1x22x120xf32>
    %70 = vector.shape_cast %69 : vector<1x22x120xf32> to vector<22x120xf32>
    %c176_88 = arith.constant 176 : index
    %c120_89 = arith.constant 120 : index
    %71 = vector.load %arg6[%c176_88, %c120_89] : memref<330x240xf32, #tpu.memory_space<vmem>>, vector<22x120xf32>
    tpu.vector_store %arg6[%c176_88, %c120_89], %70 {strides = array<i32>} : memref<330x240xf32, #tpu.memory_space<vmem>>, vector<22x120xf32>,
    %c1_90 = arith.constant 1 : index
    %c0_91 = arith.constant 0 : index
    %c9_92 = arith.constant 9 : index
    %72 = vector.load %arg1[%c1_90, %c0_91, %c9_92] : memref<2x22x134xf32, #tpu.memory_space<vmem>>, vector<1x22x120xf32>
    %73 = vector.shape_cast %72 : vector<1x22x120xf32> to vector<22x120xf32>
    %c198_93 = arith.constant 198 : index
    %c120_94 = arith.constant 120 : index
    %74 = vector.load %arg6[%c198_93, %c120_94] : memref<330x240xf32, #tpu.memory_space<vmem>>, vector<22x120xf32>
    tpu.vector_store %arg6[%c198_93, %c120_94], %73 {strides = array<i32>} : memref<330x240xf32, #tpu.memory_space<vmem>>, vector<22x120xf32>,
    %c1_95 = arith.constant 1 : index
    %c0_96 = arith.constant 0 : index
    %c10_97 = arith.constant 10 : index
    %75 = vector.load %arg1[%c1_95, %c0_96, %c10_97] : memref<2x22x134xf32, #tpu.memory_space<vmem>>, vector<1x22x120xf32>
    %76 = vector.shape_cast %75 : vector<1x22x120xf32> to vector<22x120xf32>
    %c220_98 = arith.constant 220 : index
    %c120_99 = arith.constant 120 : index
    %77 = vector.load %arg6[%c220_98, %c120_99] : memref<330x240xf32, #tpu.memory_space<vmem>>, vector<22x120xf32>
    tpu.vector_store %arg6[%c220_98, %c120_99], %76 {strides = array<i32>} : memref<330x240xf32, #tpu.memory_space<vmem>>, vector<22x120xf32>,
    %c1_100 = arith.constant 1 : index
    %c0_101 = arith.constant 0 : index
    %c11_102 = arith.constant 11 : index
    %78 = vector.load %arg1[%c1_100, %c0_101, %c11_102] : memref<2x22x134xf32, #tpu.memory_space<vmem>>, vector<1x22x120xf32>
    %79 = vector.shape_cast %78 : vector<1x22x120xf32> to vector<22x120xf32>
    %c242_103 = arith.constant 242 : index
    %c120_104 = arith.constant 120 : index
    %80 = vector.load %arg6[%c242_103, %c120_104] : memref<330x240xf32, #tpu.memory_space<vmem>>, vector<22x120xf32>
    tpu.vector_store %arg6[%c242_103, %c120_104], %79 {strides = array<i32>} : memref<330x240xf32, #tpu.memory_space<vmem>>, vector<22x120xf32>,
    %c1_105 = arith.constant 1 : index
    %c0_106 = arith.constant 0 : index
    %c12_107 = arith.constant 12 : index
    %81 = vector.load %arg1[%c1_105, %c0_106, %c12_107] : memref<2x22x134xf32, #tpu.memory_space<vmem>>, vector<1x22x120xf32>
    %82 = vector.shape_cast %81 : vector<1x22x120xf32> to vector<22x120xf32>
    %c264_108 = arith.constant 264 : index
    %c120_109 = arith.constant 120 : index
    %83 = vector.load %arg6[%c264_108, %c120_109] : memref<330x240xf32, #tpu.memory_space<vmem>>, vector<22x120xf32>
    tpu.vector_store %arg6[%c264_108, %c120_109], %82 {strides = array<i32>} : memref<330x240xf32, #tpu.memory_space<vmem>>, vector<22x120xf32>,
    %c1_110 = arith.constant 1 : index
    %c0_111 = arith.constant 0 : index
    %c13_112 = arith.constant 13 : index
    %84 = vector.load %arg1[%c1_110, %c0_111, %c13_112] : memref<2x22x134xf32, #tpu.memory_space<vmem>>, vector<1x22x120xf32>
    %85 = vector.shape_cast %84 : vector<1x22x120xf32> to vector<22x120xf32>
    %c286_113 = arith.constant 286 : index
    %c120_114 = arith.constant 120 : index
    %86 = vector.load %arg6[%c286_113, %c120_114] : memref<330x240xf32, #tpu.memory_space<vmem>>, vector<22x120xf32>
    tpu.vector_store %arg6[%c286_113, %c120_114], %85 {strides = array<i32>} : memref<330x240xf32, #tpu.memory_space<vmem>>, vector<22x120xf32>,
    %c1_115 = arith.constant 1 : index
    %c0_116 = arith.constant 0 : index
    %c14_117 = arith.constant 14 : index
    %87 = vector.load %arg1[%c1_115, %c0_116, %c14_117] : memref<2x22x134xf32, #tpu.memory_space<vmem>>, vector<1x22x120xf32>
    %88 = vector.shape_cast %87 : vector<1x22x120xf32> to vector<22x120xf32>
    %c308_118 = arith.constant 308 : index
    %c120_119 = arith.constant 120 : index
    %89 = vector.load %arg6[%c308_118, %c120_119] : memref<330x240xf32, #tpu.memory_space<vmem>>, vector<22x120xf32>
    tpu.vector_store %arg6[%c308_118, %c120_119], %88 {strides = array<i32>} : memref<330x240xf32, #tpu.memory_space<vmem>>, vector<22x120xf32>,
    %c0_120 = arith.constant 0 : index
    %c0_121 = arith.constant 0 : index
    %90 = vector.load %arg2[%c0_120, %c0_121] : memref<40x330xf32, #tpu.memory_space<vmem>>, vector<40x330xf32>
    %c0_122 = arith.constant 0 : index
    %c0_123 = arith.constant 0 : index
    %91 = vector.load %arg6[%c0_122, %c0_123] : memref<330x240xf32, #tpu.memory_space<vmem>>, vector<330x240xf32>
    %cst = arith.constant dense<0.000000e+00> : vector<40x240xf32>
    %92 = tpu.matmul %90, %91, %cst {dimension_numbers = #tpu.dot_dimension_numbers<[1], [0], [0], [1], [0, 0, 1, 1], [], []>} : vector<40x330xf32>, vector<330x240xf32>, vector<40x240xf32> -> vector<40x240xf32>
    %c0_124 = arith.constant 0 : index
    %c0_125 = arith.constant 0 : index
    %93 = vector.load %arg3[%c0_124, %c0_125] : memref<40x1xf32, #tpu.memory_space<vmem>>, vector<40x1xf32>
    %94 = vector.broadcast %93 : vector<40x1xf32> to vector<40x240xf32>
    %95 = arith.addf %92, %94 : vector<40x240xf32>
    %96 = arith.mulf %95, %95 : vector<40x240xf32>
    %c0_126 = arith.constant 0 : index
    %c0_127 = arith.constant 0 : index
    %97 = vector.load %arg4[%c0_126, %c0_127] : memref<240x8xf32, #tpu.memory_space<vmem>>, vector<240x8xf32>
    %cst_128 = arith.constant dense<0.000000e+00> : vector<40x8xf32>
    %98 = tpu.matmul %96, %97, %cst_128 {dimension_numbers = #tpu.dot_dimension_numbers<[1], [0], [0], [1], [0, 0, 1, 1], [], []>} : vector<40x240xf32>, vector<240x8xf32>, vector<40x8xf32> -> vector<40x8xf32>
    %99 = math.log %98 : vector<40x8xf32>
    %c0_129 = arith.constant 0 : index
    %c0_130 = arith.constant 0 : index
    %c0_131 = arith.constant 0 : index
    %100 = vector.load %arg5[%c0_129, %c0_130, %c0_131] : memref<1x40x8xf32, #tpu.memory_space<vmem>>, vector<1x40x8xf32>
    %101 = vector.shape_cast %100 : vector<1x40x8xf32> to vector<40x8xf32>
    %102 = vector.shape_cast %99 : vector<40x8xf32> to vector<1x40x8xf32>
    tpu.vector_store %arg5[%c0_129, %c0_130, %c0_131], %102 {strides = array<i32>} : memref<1x40x8xf32, #tpu.memory_space<vmem>>, vector<1x40x8xf32>,
    return
  }
  func.func @transform_0(%arg0: i32) -> (i32, i32, i32) {
    %c0_i32 = arith.constant 0 : i32
    %c0_i32_0 = arith.constant 0 : i32
    %c0_i32_1 = arith.constant 0 : i32
    return %arg0, %c0_i32, %c0_i32_0 : i32, i32, i32
  }
  func.func @transform_1(%arg0: i32) -> (i32, i32) {
    %c0_i32 = arith.constant 0 : i32
    %c0_i32_0 = arith.constant 0 : i32
    %c0_i32_1 = arith.constant 0 : i32
    return %c0_i32, %c0_i32_0 : i32, i32
  }
  func.func @transform_2(%arg0: i32) -> (i32, i32) {
    %c0_i32 = arith.constant 0 : i32
    %c0_i32_0 = arith.constant 0 : i32
    %c0_i32_1 = arith.constant 0 : i32
    return %c0_i32, %c0_i32_0 : i32, i32
  }
  func.func @transform_3(%arg0: i32) -> (i32, i32) {
    %c0_i32 = arith.constant 0 : i32
    %c0_i32_0 = arith.constant 0 : i32
    %c0_i32_1 = arith.constant 0 : i32
    return %c0_i32, %c0_i32_0 : i32, i32
  }
  func.func @transform_4(%arg0: i32) -> (i32, i32, i32) {
    %c0_i32 = arith.constant 0 : i32
    %c0_i32_0 = arith.constant 0 : i32
    %c0_i32_1 = arith.constant 0 : i32
    return %arg0, %c0_i32, %c0_i32_0 : i32, i32, i32
  }
}

</mosaic_0001>

<llo_original>
// kernel: simplenet_forward.1
$region0: #{simplenet_forward.1}
  #allocation0 [shape = 'u32[]', space=smem, size = 0x4, offset = 0x4, fixed_abs, tag = 'smem constant byte address 0x4 - core index']
  #allocation1 [shape = 'u32[144,128]{1,0:T(1,128)}', space=vmem, size = 0x12000, scoped, tag = 'internal scratch']
  #allocation2 [shape = 'f32[330,240]{1,0:T(8,128)}', space=vmem, size = 0x54000, scoped, tag = 'scratch operand']
  %s0 = inlined_call_operand.vmem [shape: f32[2,22,134], index: 0, kind: input, shape index: {}]
  %s1 = inlined_call_operand.vmem [shape: f32[40,330], index: 1, kind: input, shape index: {}]
  %s2 = inlined_call_operand.vmem [shape: f32[40,1], index: 2, kind: input, shape index: {}]
  %s3 = inlined_call_operand.vmem [shape: f32[240,8], index: 3, kind: input, shape index: {}]
  %s4 = inlined_call_operand.vmem [shape: f32[1,40,8], index: 4, kind: output, shape index: {}]
  %s5 = sld [smem:[#allocation0]]
  $region26: #{simplenet_forward.1} parent=0
    _
  %s7 = ssub.s32 1, %s5
  %s8 = scalar_select 0, %s7, %s5
  // Predicated region
  $region2: #{simplenet_forward.1} parent=0 // pred_check
    _
  $region3: #{simplenet_forward.1} parent=0 // pred_check_branch
    %10 = sbr.rel (0) target = $region5
  $region4: #{simplenet_forward.1} parent=0 // pred_region
    _
  $region5: #{simplenet_forward.1} parent=0 // pred_fallthru
    _
  // Predicated region
  $region6: #{simplenet_forward.1} parent=0 // pred_check
    _
  $region7: #{simplenet_forward.1} parent=0 // pred_check_branch
    %12 = sbr.rel (0) target = $region9
  $region8: #{simplenet_forward.1} parent=0 // pred_region
    _
  $region9: #{simplenet_forward.1} parent=0 // pred_fallthru
    _
  // Predicated region
  $region10: #{simplenet_forward.1} parent=0 // pred_check
    _
  $region11: #{simplenet_forward.1} parent=0 // pred_check_branch
    %14 = sbr.rel (0) target = $region13
  $region12: #{simplenet_forward.1} parent=0 // pred_region
    _
  $region13: #{simplenet_forward.1} parent=0 // pred_fallthru
    _
  // Predicated region
  $region14: #{simplenet_forward.1} parent=0 // pred_check
    _
  $region15: #{simplenet_forward.1} parent=0 // pred_check_branch
    %16 = sbr.rel (0) target = $region17
  $region16: #{simplenet_forward.1} parent=0 // pred_region
    _
  $region17: #{simplenet_forward.1} parent=0 // pred_fallthru
    _
  %v17 = vld [vmem:[%s0] sm:$0xff]
  %v18 = vld [vmem:[%s0 + $0x10] sm:$0xff]
  %v19 = vld [vmem:[%s0 + $0x20] sm:$0x3f]
  %vm20 = vcmask 982016
  %21 = vst.msk [vmem:[#allocation2] sm:$0xff] %vm20, %v17
  %22 = vst.msk [vmem:[#allocation2 + $0x10] sm:$0xff] %vm20, %v18
  %vm23 = vcmask 979968
  %24 = vst.msk [vmem:[#allocation2 + $0x20] sm:$0x3f] %vm23, %v19
  %v25 = vld [vmem:[%s0] sm:$0xff]
  %v26 = vld [vmem:[%s0 + $0x10] sm:$0xff]
  %v27 = vld [vmem:[%s0 + $0x20] sm:$0x3f]
  %vm31 = vcmask 1045504
  %v32 = vrot.slane %v25, 2
  %v33 = vrot.slane %v26, 2
  %v34 = vsel %vm31, %v32, %v33
  %v35 = vrot.slane %v27, 2
  %v36 = vsel %vm31, %v33, %v35
  %37 = vrot.lane.b32.xlu0 %v32, 127
  %v38 = vpop.permute.xlu0 %37
  %39 = vrot.lane.b32.xlu0 %v34, 127
  %v40 = vpop.permute.xlu0 %39
  %41 = vrot.lane.b32.xlu0 %v36, 127
  %v42 = vpop.permute.xlu0 %41
  %43 = vrot.lane.b32.xlu0 %v35, 127
  %v44 = vpop.permute.xlu0 %43
  %vm49 = vcmask 982022
  %50 = vst.msk [vmem:[#allocation2 + $0x20] sm:$0xc0] %vm49, %v38
  %51 = vst.msk [vmem:[#allocation2 + $0x30] sm:$0xff] %vm20, %v40
  %52 = vst.msk [vmem:[#allocation2 + $0x40] sm:$0xff] %vm20, %v42
  %vm53 = vcmask 977920
  %54 = vst.msk [vmem:[#allocation2 + $0x50] sm:$0xf] %vm53, %v44
  %v55 = vld [vmem:[%s0] sm:$0xff]
  %v56 = vld [vmem:[%s0 + $0x10] sm:$0xff]
  %v57 = vld [vmem:[%s0 + $0x20] sm:$0x3f]
  %vm61 = vcmask 1043456
  %v62 = vrot.slane %v55, 4
  %v63 = vrot.slane %v56, 4
  %v64 = vsel %vm61, %v62, %v63
  %v65 = vrot.slane %v57, 4
  %v66 = vsel %vm61, %v63, %v65
  %67 = vrot.lane.b32.xlu0 %v62, 126
  %v68 = vpop.permute.xlu0 %67
  %69 = vrot.lane.b32.xlu0 %v64, 126
  %v70 = vpop.permute.xlu0 %69
  %71 = vrot.lane.b32.xlu0 %v66, 126
  %v72 = vpop.permute.xlu0 %71
  %73 = vrot.lane.b32.xlu0 %v65, 126
  %v74 = vpop.permute.xlu0 %73
  %vm79 = vcmask 982020
  %80 = vst.msk [vmem:[#allocation2 + $0x50] sm:$0xf0] %vm79, %v68
  %81 = vst.msk [vmem:[#allocation2 + $0x60] sm:$0xff] %vm20, %v70
  %82 = vst.msk [vmem:[#allocation2 + $0x70] sm:$0xff] %vm20, %v72
  %vm83 = vcmask 975872
  %84 = vst.msk [vmem:[#allocation2 + $0x80] sm:$0x3] %vm83, %v74
  %v85 = vld [vmem:[%s0] sm:$0xff]
  %v86 = vld [vmem:[%s0 + $0x10] sm:$0xff]
  %v87 = vld [vmem:[%s0 + $0x20] sm:$0x3f]
  %vm91 = vcmask 1041408
  %v92 = vrot.slane %v85, 6
  %v93 = vrot.slane %v86, 6
  %v94 = vsel %vm91, %v92, %v93
  %v95 = vrot.slane %v87, 6
  %v96 = vsel %vm91, %v93, %v95
  %97 = vrot.lane.b32.xlu0 %v92, 125
  %v98 = vpop.permute.xlu0 %97
  %99 = vrot.lane.b32.xlu0 %v94, 125
  %v100 = vpop.permute.xlu0 %99
  %101 = vrot.lane.b32.xlu0 %v96, 125
  %v102 = vpop.permute.xlu0 %101
  %vm106 = vcmask 982018
  %107 = vst.msk [vmem:[#allocation2 + $0x80] sm:$0xfc] %vm106, %v98
  %108 = vst.msk [vmem:[#allocation2 + $0x90] sm:$0xff] %vm20, %v100
  %109 = vst.msk [vmem:[#allocation2 + $0xa0] sm:$0xff] %vm20, %v102
  %v110 = vld [vmem:[%s0] sm:$0xff]
  %v111 = vld [vmem:[%s0 + $0x10] sm:$0xff]
  %v112 = vld [vmem:[%s0 + $0x20] sm:$0x3f]
  %116 = vrot.lane.b32.xlu0 %v110, 124
  %v117 = vpop.permute.xlu0 %116
  %118 = vrot.lane.b32.xlu0 %v111, 124
  %v119 = vpop.permute.xlu0 %118
  %120 = vrot.lane.b32.xlu0 %v112, 124
  %v121 = vpop.permute.xlu0 %120
  %125 = vst.msk [vmem:[#allocation2 + $0xb0] sm:$0xff] %vm20, %v117
  %126 = vst.msk [vmem:[#allocation2 + $0xc0] sm:$0xff] %vm20, %v119
  %127 = vst.msk [vmem:[#allocation2 + $0xd0] sm:$0x3f] %vm23, %v121
  %v128 = vld [vmem:[%s0] sm:$0xff]
  %v129 = vld [vmem:[%s0 + $0x10] sm:$0xff]
  %v130 = vld [vmem:[%s0 + $0x20] sm:$0x3f]
  %v134 = vrot.slane %v128, 2
  %v135 = vrot.slane %v129, 2
  %v136 = vsel %vm31, %v134, %v135
  %v137 = vrot.slane %v130, 2
  %v138 = vsel %vm31, %v135, %v137
  %139 = vrot.lane.b32.xlu0 %v134, 123
  %v140 = vpop.permute.xlu0 %139
  %141 = vrot.lane.b32.xlu0 %v136, 123
  %v142 = vpop.permute.xlu0 %141
  %143 = vrot.lane.b32.xlu0 %v138, 123
  %v144 = vpop.permute.xlu0 %143
  %145 = vrot.lane.b32.xlu0 %v137, 123
  %v146 = vpop.permute.xlu0 %145
  %151 = vst.msk [vmem:[#allocation2 + $0xd0] sm:$0xc0] %vm49, %v140
  %152 = vst.msk [vmem:[#allocation2 + $0xe0] sm:$0xff] %vm20, %v142
  %153 = vst.msk [vmem:[#allocation2 + $0xf0] sm:$0xff] %vm20, %v144
  %154 = vst.msk [vmem:[#allocation2 + $0x100] sm:$0xf] %vm53, %v146
  %v155 = vld [vmem:[%s0] sm:$0xff]
  %v156 = vld [vmem:[%s0 + $0x10] sm:$0xff]
  %v157 = vld [vmem:[%s0 + $0x20] sm:$0x3f]
  %v161 = vrot.slane %v155, 4
  %v162 = vrot.slane %v156, 4
  %v163 = vsel %vm61, %v161, %v162
  %v164 = vrot.slane %v157, 4
  %v165 = vsel %vm61, %v162, %v164
  %166 = vrot.lane.b32.xlu0 %v161, 122
  %v167 = vpop.permute.xlu0 %166
  %168 = vrot.lane.b32.xlu0 %v163, 122
  %v169 = vpop.permute.xlu0 %168
  %170 = vrot.lane.b32.xlu0 %v165, 122
  %v171 = vpop.permute.xlu0 %170
  %172 = vrot.lane.b32.xlu0 %v164, 122
  %v173 = vpop.permute.xlu0 %172
  %178 = vst.msk [vmem:[#allocation2 + $0x100] sm:$0xf0] %vm79, %v167
  %179 = vst.msk [vmem:[#allocation2 + $0x110] sm:$0xff] %vm20, %v169
  %180 = vst.msk [vmem:[#allocation2 + $0x120] sm:$0xff] %vm20, %v171
  %181 = vst.msk [vmem:[#allocation2 + $0x130] sm:$0x3] %vm83, %v173
  %v182 = vld [vmem:[%s0] sm:$0xff]
  %v183 = vld [vmem:[%s0 + $0x10] sm:$0xff]
  %v184 = vld [vmem:[%s0 + $0x20] sm:$0x3f]
  %v188 = vrot.slane %v182, 6
  %v189 = vrot.slane %v183, 6
  %v190 = vsel %vm91, %v188, %v189
  %v191 = vrot.slane %v184, 6
  %v192 = vsel %vm91, %v189, %v191
  %193 = vrot.lane.b32.xlu0 %v188, 121
  %v194 = vpop.permute.xlu0 %193
  %195 = vrot.lane.b32.xlu0 %v190, 121
  %v196 = vpop.permute.xlu0 %195
  %197 = vrot.lane.b32.xlu0 %v192, 121
  %v198 = vpop.permute.xlu0 %197
  %202 = vst.msk [vmem:[#allocation2 + $0x130] sm:$0xfc] %vm106, %v194
  %203 = vst.msk [vmem:[#allocation2 + $0x140] sm:$0xff] %vm20, %v196
  %204 = vst.msk [vmem:[#allocation2 + $0x150] sm:$0xff] %vm20, %v198
  %v205 = vld [vmem:[%s0] sm:$0xff]
  %v206 = vld [vmem:[%s0 + $0x10] sm:$0xff]
  %v207 = vld [vmem:[%s0 + $0x20] sm:$0x3f]
  %211 = vrot.lane.b32.xlu0 %v205, 120
  %v212 = vpop.permute.xlu0 %211
  %213 = vrot.lane.b32.xlu0 %v206, 120
  %v214 = vpop.permute.xlu0 %213
  %215 = vrot.lane.b32.xlu0 %v207, 120
  %v216 = vpop.permute.xlu0 %215
  %220 = vst.msk [vmem:[#allocation2 + $0x160] sm:$0xff] %vm20, %v212
  %221 = vst.msk [vmem:[#allocation2 + $0x170] sm:$0xff] %vm20, %v214
  %222 = vst.msk [vmem:[#allocation2 + $0x180] sm:$0x3f] %vm23, %v216
  %v223 = vld [vmem:[%s0] sm:$0xff]
  %v224 = vld [vmem:[%s0 + $0x8] sm:$0xff]
  %v225 = vld [vmem:[%s0 + $0x10] sm:$0xff]
  %v226 = vld [vmem:[%s0 + $0x18] sm:$0xff]
  %v227 = vld [vmem:[%s0 + $0x20] sm:$0x3f]
  %v228 = vld [vmem:[%s0 + $0x28] sm:$0x3f]
  %v235 = vrot.slane %v223, 2
  %v236 = vrot.slane %v224, 2
  %v237 = vrot.slane %v225, 2
  %v238 = vsel %vm31, %v235, %v237
  %v239 = vrot.slane %v226, 2
  %v240 = vsel %vm31, %v236, %v239
  %v241 = vrot.slane %v227, 2
  %v242 = vsel %vm31, %v237, %v241
  %v243 = vrot.slane %v228, 2
  %v244 = vsel %vm31, %v239, %v243
  %245 = vrot.lane.b32.xlu0 %v235, 119
  %v246 = vpop.permute.xlu0 %245
  %247 = vrot.lane.b32.xlu0 %v236, 119
  %v248 = vpop.permute.xlu0 %247
  %249 = vrot.lane.b32.xlu0 %v238, 119
  %v250 = vpop.permute.xlu0 %249
  %251 = vrot.lane.b32.xlu0 %v240, 119
  %v252 = vpop.permute.xlu0 %251
  %253 = vrot.lane.b32.xlu0 %v242, 119
  %v254 = vpop.permute.xlu0 %253
  %255 = vrot.lane.b32.xlu0 %v244, 119
  %v256 = vpop.permute.xlu0 %255
  %257 = vrot.lane.b32.xlu0 %v241, 119
  %v258 = vpop.permute.xlu0 %257
  %259 = vrot.lane.b32.xlu0 %v243, 119
  %v260 = vpop.permute.xlu0 %259
  %vm261 = vcmask 973824
  %v262 = vsel %vm261, %v246, %v248
  %v263 = vsel %vm261, %v250, %v252
  %v264 = vsel %vm261, %v254, %v256
  %v265 = vsel %vm261, %v258, %v260
  %270 = vst.msk [vmem:[#allocation2 + $0x180] sm:$0xc0] %vm49, %v262
  %271 = vst.msk [vmem:[#allocation2 + $0x190] sm:$0xff] %vm20, %v263
  %272 = vst.msk [vmem:[#allocation2 + $0x1a0] sm:$0xff] %vm20, %v264
  %273 = vst.msk [vmem:[#allocation2 + $0x1b0] sm:$0xf] %vm53, %v265
  %v274 = vld [vmem:[%s0] sm:$0xff]
  %v275 = vld [vmem:[%s0 + $0x8] sm:$0xff]
  %v276 = vld [vmem:[%s0 + $0x10] sm:$0xff]
  %v277 = vld [vmem:[%s0 + $0x18] sm:$0xff]
  %v278 = vld [vmem:[%s0 + $0x20] sm:$0x3f]
  %v279 = vld [vmem:[%s0 + $0x28] sm:$0x3f]
  %v286 = vrot.slane %v274, 4
  %v287 = vrot.slane %v275, 4
  %v288 = vrot.slane %v276, 4
  %v289 = vsel %vm61, %v286, %v288
  %v290 = vrot.slane %v277, 4
  %v291 = vsel %vm61, %v287, %v290
  %v292 = vrot.slane %v278, 4
  %v293 = vsel %vm61, %v288, %v292
  %v294 = vrot.slane %v279, 4
  %v295 = vsel %vm61, %v290, %v294
  %296 = vrot.lane.b32.xlu0 %v286, 118
  %v297 = vpop.permute.xlu0 %296
  %298 = vrot.lane.b32.xlu0 %v287, 118
  %v299 = vpop.permute.xlu0 %298
  %300 = vrot.lane.b32.xlu0 %v289, 118
  %v301 = vpop.permute.xlu0 %300
  %302 = vrot.lane.b32.xlu0 %v291, 118
  %v303 = vpop.permute.xlu0 %302
  %304 = vrot.lane.b32.xlu0 %v293, 118
  %v305 = vpop.permute.xlu0 %304
  %306 = vrot.lane.b32.xlu0 %v295, 118
  %v307 = vpop.permute.xlu0 %306
  %308 = vrot.lane.b32.xlu0 %v292, 118
  %v309 = vpop.permute.xlu0 %308
  %310 = vrot.lane.b32.xlu0 %v294, 118
  %v311 = vpop.permute.xlu0 %310
  %vm312 = vcmask 965632
  %v313 = vsel %vm312, %v297, %v299
  %v314 = vsel %vm312, %v301, %v303
  %v315 = vsel %vm312, %v305, %v307
  %v316 = vsel %vm312, %v309, %v311
  %321 = vst.msk [vmem:[#allocation2 + $0x1b0] sm:$0xf0] %vm79, %v313
  %322 = vst.msk [vmem:[#allocation2 + $0x1c0] sm:$0xff] %vm20, %v314
  %323 = vst.msk [vmem:[#allocation2 + $0x1d0] sm:$0xff] %vm20, %v315
  %324 = vst.msk [vmem:[#allocation2 + $0x1e0] sm:$0x3] %vm83, %v316
  %v325 = vld [vmem:[%s0] sm:$0xff]
  %v326 = vld [vmem:[%s0 + $0x8] sm:$0xff]
  %v327 = vld [vmem:[%s0 + $0x10] sm:$0xff]
  %v328 = vld [vmem:[%s0 + $0x18] sm:$0xff]
  %v329 = vld [vmem:[%s0 + $0x20] sm:$0x3f]
  %v330 = vld [vmem:[%s0 + $0x28] sm:$0x3f]
  %v337 = vrot.slane %v325, 6
  %v338 = vrot.slane %v326, 6
  %v339 = vrot.slane %v327, 6
  %v340 = vsel %vm91, %v337, %v339
  %v341 = vrot.slane %v328, 6
  %v342 = vsel %vm91, %v338, %v341
  %v343 = vrot.slane %v329, 6
  %v344 = vsel %vm91, %v339, %v343
  %v345 = vrot.slane %v330, 6
  %v346 = vsel %vm91, %v341, %v345
  %347 = vrot.lane.b32.xlu0 %v337, 117
  %v348 = vpop.permute.xlu0 %347
  %349 = vrot.lane.b32.xlu0 %v338, 117
  %v350 = vpop.permute.xlu0 %349
  %351 = vrot.lane.b32.xlu0 %v340, 117
  %v352 = vpop.permute.xlu0 %351
  %353 = vrot.lane.b32.xlu0 %v342, 117
  %v354 = vpop.permute.xlu0 %353
  %355 = vrot.lane.b32.xlu0 %v344, 117
  %v356 = vpop.permute.xlu0 %355
  %357 = vrot.lane.b32.xlu0 %v346, 117
  %v358 = vpop.permute.xlu0 %357
  %vm359 = vcmask 957440
  %v360 = vsel %vm359, %v348, %v350
  %v361 = vsel %vm359, %v352, %v354
  %v362 = vsel %vm359, %v356, %v358
  %366 = vst.msk [vmem:[#allocation2 + $0x1e0] sm:$0xfc] %vm106, %v360
  %367 = vst.msk [vmem:[#allocation2 + $0x1f0] sm:$0xff] %vm20, %v361
  %368 = vst.msk [vmem:[#allocation2 + $0x200] sm:$0xff] %vm20, %v362
  %v369 = vld [vmem:[%s0] sm:$0xff]
  %v370 = vld [vmem:[%s0 + $0x8] sm:$0xff]
  %v371 = vld [vmem:[%s0 + $0x10] sm:$0xff]
  %v372 = vld [vmem:[%s0 + $0x18] sm:$0xff]
  %v373 = vld [vmem:[%s0 + $0x20] sm:$0x3f]
  %v374 = vld [vmem:[%s0 + $0x28] sm:$0x3f]
  %381 = vrot.lane.b32.xlu0 %v369, 116
  %v382 = vpop.permute.xlu0 %381
  %383 = vrot.lane.b32.xlu0 %v370, 116
  %v384 = vpop.permute.xlu0 %383
  %385 = vrot.lane.b32.xlu0 %v371, 116
  %v386 = vpop.permute.xlu0 %385
  %387 = vrot.lane.b32.xlu0 %v372, 116
  %v388 = vpop.permute.xlu0 %387
  %389 = vrot.lane.b32.xlu0 %v373, 116
  %v390 = vpop.permute.xlu0 %389
  %391 = vrot.lane.b32.xlu0 %v374, 116
  %v392 = vpop.permute.xlu0 %391
  %vm393 = vcmask 949248
  %v394 = vsel %vm393, %v382, %v384
  %v395 = vsel %vm393, %v386, %v388
  %v396 = vsel %vm393, %v390, %v392
  %400 = vst.msk [vmem:[#allocation2 + $0x210] sm:$0xff] %vm20, %v394
  %401 = vst.msk [vmem:[#allocation2 + $0x220] sm:$0xff] %vm20, %v395
  %402 = vst.msk [vmem:[#allocation2 + $0x230] sm:$0x3f] %vm23, %v396
  %v403 = vld [vmem:[%s0] sm:$0xff]
  %v404 = vld [vmem:[%s0 + $0x8] sm:$0xff]
  %v405 = vld [vmem:[%s0 + $0x10] sm:$0xff]
  %v406 = vld [vmem:[%s0 + $0x18] sm:$0xff]
  %v407 = vld [vmem:[%s0 + $0x20] sm:$0x3f]
  %v408 = vld [vmem:[%s0 + $0x28] sm:$0x3f]
  %v415 = vrot.slane %v403, 2
  %v416 = vrot.slane %v404, 2
  %v417 = vrot.slane %v405, 2
  %v418 = vsel %vm31, %v415, %v417
  %v419 = vrot.slane %v406, 2
  %v420 = vsel %vm31, %v416, %v419
  %v421 = vrot.slane %v407, 2
  %v422 = vsel %vm31, %v417, %v421
  %v423 = vrot.slane %v408, 2
  %v424 = vsel %vm31, %v419, %v423
  %425 = vrot.lane.b32.xlu0 %v415, 115
  %v426 = vpop.permute.xlu0 %425
  %427 = vrot.lane.b32.xlu0 %v416, 115
  %v428 = vpop.permute.xlu0 %427
  %429 = vrot.lane.b32.xlu0 %v418, 115
  %v430 = vpop.permute.xlu0 %429
  %431 = vrot.lane.b32.xlu0 %v420, 115
  %v432 = vpop.permute.xlu0 %431
  %433 = vrot.lane.b32.xlu0 %v422, 115
  %v434 = vpop.permute.xlu0 %433
  %435 = vrot.lane.b32.xlu0 %v424, 115
  %v436 = vpop.permute.xlu0 %435
  %437 = vrot.lane.b32.xlu0 %v421, 115
  %v438 = vpop.permute.xlu0 %437
  %439 = vrot.lane.b32.xlu0 %v423, 115
  %v440 = vpop.permute.xlu0 %439
  %vm441 = vcmask 941056
  %v442 = vsel %vm441, %v426, %v428
  %v443 = vsel %vm441, %v430, %v432
  %v444 = vsel %vm441, %v434, %v436
  %v445 = vsel %vm441, %v438, %v440
  %450 = vst.msk [vmem:[#allocation2 + $0x230] sm:$0xc0] %vm49, %v442
  %451 = vst.msk [vmem:[#allocation2 + $0x240] sm:$0xff] %vm20, %v443
  %452 = vst.msk [vmem:[#allocation2 + $0x250] sm:$0xff] %vm20, %v444
  %453 = vst.msk [vmem:[#allocation2 + $0x260] sm:$0xf] %vm53, %v445
  %v454 = vld [vmem:[%s0] sm:$0xff]
  %v455 = vld [vmem:[%s0 + $0x8] sm:$0xff]
  %v456 = vld [vmem:[%s0 + $0x10] sm:$0xff]
  %v457 = vld [vmem:[%s0 + $0x18] sm:$0xff]
  %v458 = vld [vmem:[%s0 + $0x20] sm:$0x3f]
  %v459 = vld [vmem:[%s0 + $0x28] sm:$0x3f]
  %v466 = vrot.slane %v454, 4
  %v467 = vrot.slane %v455, 4
  %v468 = vrot.slane %v456, 4
  %v469 = vsel %vm61, %v466, %v468
  %v470 = vrot.slane %v457, 4
  %v471 = vsel %vm61, %v467, %v470
  %v472 = vrot.slane %v458, 4
  %v473 = vsel %vm61, %v468, %v472
  %v474 = vrot.slane %v459, 4
  %v475 = vsel %vm61, %v470, %v474
  %476 = vrot.lane.b32.xlu0 %v466, 114
  %v477 = vpop.permute.xlu0 %476
  %478 = vrot.lane.b32.xlu0 %v467, 114
  %v479 = vpop.permute.xlu0 %478
  %480 = vrot.lane.b32.xlu0 %v469, 114
  %v481 = vpop.permute.xlu0 %480
  %482 = vrot.lane.b32.xlu0 %v471, 114
  %v483 = vpop.permute.xlu0 %482
  %484 = vrot.lane.b32.xlu0 %v473, 114
  %v485 = vpop.permute.xlu0 %484
  %486 = vrot.lane.b32.xlu0 %v475, 114
  %v487 = vpop.permute.xlu0 %486
  %488 = vrot.lane.b32.xlu0 %v472, 114
  %v489 = vpop.permute.xlu0 %488
  %490 = vrot.lane.b32.xlu0 %v474, 114
  %v491 = vpop.permute.xlu0 %490
  %vm492 = vcmask 932864
  %v493 = vsel %vm492, %v477, %v479
  %v494 = vsel %vm492, %v481, %v483
  %v495 = vsel %vm492, %v485, %v487
  %v496 = vsel %vm492, %v489, %v491
  %501 = vst.msk [vmem:[#allocation2 + $0x260] sm:$0xf0] %vm79, %v493
  %502 = vst.msk [vmem:[#allocation2 + $0x270] sm:$0xff] %vm20, %v494
  %503 = vst.msk [vmem:[#allocation2 + $0x280] sm:$0xff] %vm20, %v495
  %504 = vst.msk [vmem:[#allocation2 + $0x290] sm:$0x3] %vm83, %v496
  %s505 = scalar_lea.vmem %s0, 48
  %v506 = vld [vmem:[%s505] sm:$0xff]
  %v507 = vld [vmem:[%s505 + $0x10] sm:$0xff]
  %v508 = vld [vmem:[%s505 + $0x20] sm:$0x3f]
  %512 = vrot.lane.b32.xlu0 %v506, 120
  %v513 = vpop.permute.xlu0 %512
  %514 = vrot.lane.b32.xlu0 %v507, 120
  %v515 = vpop.permute.xlu0 %514
  %516 = vrot.lane.b32.xlu0 %v508, 120
  %v517 = vpop.permute.xlu0 %516
  %vm521 = vcmask 1048512
  %522 = vst.msk [vmem:[#allocation2] sm:$0xff] %vm521, %v513
  %vm523 = vcmask 916480
  %524 = vst.msk [vmem:[#allocation2 + $0x8] sm:$0xff] %vm523, %v513
  %525 = vst.msk [vmem:[#allocation2 + $0x10] sm:$0xff] %vm521, %v515
  %526 = vst.msk [vmem:[#allocation2 + $0x18] sm:$0xff] %vm523, %v515
  %vm527 = vcmask 1046464
  %528 = vst.msk [vmem:[#allocation2 + $0x20] sm:$0x3f] %vm527, %v517
  %vm529 = vcmask 914432
  %530 = vst.msk [vmem:[#allocation2 + $0x28] sm:$0x3f] %vm529, %v517
  %v531 = vld [vmem:[%s505] sm:$0xff]
  %v532 = vld [vmem:[%s505 + $0x10] sm:$0xff]
  %v533 = vld [vmem:[%s505 + $0x20] sm:$0x3f]
  %v537 = vrot.slane %v531, 2
  %v538 = vrot.slane %v532, 2
  %v539 = vsel %vm31, %v537, %v538
  %v540 = vrot.slane %v533, 2
  %v541 = vsel %vm31, %v538, %v540
  %542 = vrot.lane.b32.xlu0 %v537, 119
  %v543 = vpop.permute.xlu0 %542
  %544 = vrot.lane.b32.xlu0 %v539, 119
  %v545 = vpop.permute.xlu0 %544
  %546 = vrot.lane.b32.xlu0 %v541, 119
  %v547 = vpop.permute.xlu0 %546
  %548 = vrot.lane.b32.xlu0 %v540, 119
  %v549 = vpop.permute.xlu0 %548
  %vm554 = vcmask 1048518
  %555 = vst.msk [vmem:[#allocation2 + $0x20] sm:$0xc0] %vm554, %v543
  %vm556 = vcmask 916486
  %557 = vst.msk [vmem:[#allocation2 + $0x28] sm:$0xc0] %vm556, %v543
  %558 = vst.msk [vmem:[#allocation2 + $0x30] sm:$0xff] %vm521, %v545
  %559 = vst.msk [vmem:[#allocation2 + $0x38] sm:$0xff] %vm523, %v545
  %560 = vst.msk [vmem:[#allocation2 + $0x40] sm:$0xff] %vm521, %v547
  %561 = vst.msk [vmem:[#allocation2 + $0x48] sm:$0xff] %vm523, %v547
  %vm562 = vcmask 1044416
  %563 = vst.msk [vmem:[#allocation2 + $0x50] sm:$0xf] %vm562, %v549
  %vm564 = vcmask 912384
  %565 = vst.msk [vmem:[#allocation2 + $0x58] sm:$0xf] %vm564, %v549
  %v566 = vld [vmem:[%s505] sm:$0xff]
  %v567 = vld [vmem:[%s505 + $0x10] sm:$0xff]
  %v568 = vld [vmem:[%s505 + $0x20] sm:$0x3f]
  %v572 = vrot.slane %v566, 4
  %v573 = vrot.slane %v567, 4
  %v574 = vsel %vm61, %v572, %v573
  %v575 = vrot.slane %v568, 4
  %v576 = vsel %vm61, %v573, %v575
  %577 = vrot.lane.b32.xlu0 %v572, 118
  %v578 = vpop.permute.xlu0 %577
  %579 = vrot.lane.b32.xlu0 %v574, 118
  %v580 = vpop.permute.xlu0 %579
  %581 = vrot.lane.b32.xlu0 %v576, 118
  %v582 = vpop.permute.xlu0 %581
  %583 = vrot.lane.b32.xlu0 %v575, 118
  %v584 = vpop.permute.xlu0 %583
  %vm589 = vcmask 1048516
  %590 = vst.msk [vmem:[#allocation2 + $0x50] sm:$0xf0] %vm589, %v578
  %vm591 = vcmask 916484
  %592 = vst.msk [vmem:[#allocation2 + $0x58] sm:$0xf0] %vm591, %v578
  %593 = vst.msk [vmem:[#allocation2 + $0x60] sm:$0xff] %vm521, %v580
  %594 = vst.msk [vmem:[#allocation2 + $0x68] sm:$0xff] %vm523, %v580
  %595 = vst.msk [vmem:[#allocation2 + $0x70] sm:$0xff] %vm521, %v582
  %596 = vst.msk [vmem:[#allocation2 + $0x78] sm:$0xff] %vm523, %v582
  %vm597 = vcmask 1042368
  %598 = vst.msk [vmem:[#allocation2 + $0x80] sm:$0x3] %vm597, %v584
  %vm599 = vcmask 910336
  %600 = vst.msk [vmem:[#allocation2 + $0x88] sm:$0x3] %vm599, %v584
  %v601 = vld [vmem:[%s505] sm:$0xff]
  %v602 = vld [vmem:[%s505 + $0x10] sm:$0xff]
  %v603 = vld [vmem:[%s505 + $0x20] sm:$0x3f]
  %v607 = vrot.slane %v601, 6
  %v608 = vrot.slane %v602, 6
  %v609 = vsel %vm91, %v607, %v608
  %v610 = vrot.slane %v603, 6
  %v611 = vsel %vm91, %v608, %v610
  %612 = vrot.lane.b32.xlu0 %v607, 117
  %v613 = vpop.permute.xlu0 %612
  %614 = vrot.lane.b32.xlu0 %v609, 117
  %v615 = vpop.permute.xlu0 %614
  %616 = vrot.lane.b32.xlu0 %v611, 117
  %v617 = vpop.permute.xlu0 %616
  %vm621 = vcmask 1048514
  %622 = vst.msk [vmem:[#allocation2 + $0x80] sm:$0xfc] %vm621, %v613
  %vm623 = vcmask 916482
  %624 = vst.msk [vmem:[#allocation2 + $0x88] sm:$0xfc] %vm623, %v613
  %625 = vst.msk [vmem:[#allocation2 + $0x90] sm:$0xff] %vm521, %v615
  %626 = vst.msk [vmem:[#allocation2 + $0x98] sm:$0xff] %vm523, %v615
  %627 = vst.msk [vmem:[#allocation2 + $0xa0] sm:$0xff] %vm521, %v617
  %628 = vst.msk [vmem:[#allocation2 + $0xa8] sm:$0xff] %vm523, %v617
  %v629 = vld [vmem:[%s505] sm:$0xff]
  %v630 = vld [vmem:[%s505 + $0x10] sm:$0xff]
  %v631 = vld [vmem:[%s505 + $0x20] sm:$0x3f]
  %635 = vrot.lane.b32.xlu0 %v629, 116
  %v636 = vpop.permute.xlu0 %635
  %637 = vrot.lane.b32.xlu0 %v630, 116
  %v638 = vpop.permute.xlu0 %637
  %639 = vrot.lane.b32.xlu0 %v631, 116
  %v640 = vpop.permute.xlu0 %639
  %644 = vst.msk [vmem:[#allocation2 + $0xb0] sm:$0xff] %vm521, %v636
  %645 = vst.msk [vmem:[#allocation2 + $0xb8] sm:$0xff] %vm523, %v636
  %646 = vst.msk [vmem:[#allocation2 + $0xc0] sm:$0xff] %vm521, %v638
  %647 = vst.msk [vmem:[#allocation2 + $0xc8] sm:$0xff] %vm523, %v638
  %648 = vst.msk [vmem:[#allocation2 + $0xd0] sm:$0x3f] %vm527, %v640
  %649 = vst.msk [vmem:[#allocation2 + $0xd8] sm:$0x3f] %vm529, %v640
  %v650 = vld [vmem:[%s505] sm:$0xff]
  %v651 = vld [vmem:[%s505 + $0x10] sm:$0xff]
  %v652 = vld [vmem:[%s505 + $0x20] sm:$0x3f]
  %v656 = vrot.slane %v650, 2
  %v657 = vrot.slane %v651, 2
  %v658 = vsel %vm31, %v656, %v657
  %v659 = vrot.slane %v652, 2
  %v660 = vsel %vm31, %v657, %v659
  %661 = vrot.lane.b32.xlu0 %v656, 115
  %v662 = vpop.permute.xlu0 %661
  %663 = vrot.lane.b32.xlu0 %v658, 115
  %v664 = vpop.permute.xlu0 %663
  %665 = vrot.lane.b32.xlu0 %v660, 115
  %v666 = vpop.permute.xlu0 %665
  %667 = vrot.lane.b32.xlu0 %v659, 115
  %v668 = vpop.permute.xlu0 %667
  %673 = vst.msk [vmem:[#allocation2 + $0xd0] sm:$0xc0] %vm554, %v662
  %674 = vst.msk [vmem:[#allocation2 + $0xd8] sm:$0xc0] %vm556, %v662
  %675 = vst.msk [vmem:[#allocation2 + $0xe0] sm:$0xff] %vm521, %v664
  %676 = vst.msk [vmem:[#allocation2 + $0xe8] sm:$0xff] %vm523, %v664
  %677 = vst.msk [vmem:[#allocation2 + $0xf0] sm:$0xff] %vm521, %v666
  %678 = vst.msk [vmem:[#allocation2 + $0xf8] sm:$0xff] %vm523, %v666
  %679 = vst.msk [vmem:[#allocation2 + $0x100] sm:$0xf] %vm562, %v668
  %680 = vst.msk [vmem:[#allocation2 + $0x108] sm:$0xf] %vm564, %v668
  %v681 = vld [vmem:[%s505] sm:$0xff]
  %v682 = vld [vmem:[%s505 + $0x10] sm:$0xff]
  %v683 = vld [vmem:[%s505 + $0x20] sm:$0x3f]
  %v687 = vrot.slane %v681, 4
  %v688 = vrot.slane %v682, 4
  %v689 = vsel %vm61, %v687, %v688
  %v690 = vrot.slane %v683, 4
  %v691 = vsel %vm61, %v688, %v690
  %692 = vrot.lane.b32.xlu0 %v687, 114
  %v693 = vpop.permute.xlu0 %692
  %694 = vrot.lane.b32.xlu0 %v689, 114
  %v695 = vpop.permute.xlu0 %694
  %696 = vrot.lane.b32.xlu0 %v691, 114
  %v697 = vpop.permute.xlu0 %696
  %698 = vrot.lane.b32.xlu0 %v690, 114
  %v699 = vpop.permute.xlu0 %698
  %704 = vst.msk [vmem:[#allocation2 + $0x100] sm:$0xf0] %vm589, %v693
  %705 = vst.msk [vmem:[#allocation2 + $0x108] sm:$0xf0] %vm591, %v693
  %706 = vst.msk [vmem:[#allocation2 + $0x110] sm:$0xff] %vm521, %v695
  %707 = vst.msk [vmem:[#allocation2 + $0x118] sm:$0xff] %vm523, %v695
  %708 = vst.msk [vmem:[#allocation2 + $0x120] sm:$0xff] %vm521, %v697
  %709 = vst.msk [vmem:[#allocation2 + $0x128] sm:$0xff] %vm523, %v697
  %710 = vst.msk [vmem:[#allocation2 + $0x130] sm:$0x3] %vm597, %v699
  %711 = vst.msk [vmem:[#allocation2 + $0x138] sm:$0x3] %vm599, %v699
  %v712 = vld [vmem:[%s505] sm:$0xff]
  %v713 = vld [vmem:[%s505 + $0x10] sm:$0xff]
  %v714 = vld [vmem:[%s505 + $0x20] sm:$0x3f]
  %v718 = vrot.slane %v712, 6
  %v719 = vrot.slane %v713, 6
  %v720 = vsel %vm91, %v718, %v719
  %v721 = vrot.slane %v714, 6
  %v722 = vsel %vm91, %v719, %v721
  %723 = vrot.lane.b32.xlu0 %v718, 113
  %v724 = vpop.permute.xlu0 %723
  %725 = vrot.lane.b32.xlu0 %v720, 113
  %v726 = vpop.permute.xlu0 %725
  %727 = vrot.lane.b32.xlu0 %v722, 113
  %v728 = vpop.permute.xlu0 %727
  %732 = vst.msk [vmem:[#allocation2 + $0x130] sm:$0xfc] %vm621, %v724
  %733 = vst.msk [vmem:[#allocation2 + $0x138] sm:$0xfc] %vm623, %v724
  %734 = vst.msk [vmem:[#allocation2 + $0x140] sm:$0xff] %vm521, %v726
  %735 = vst.msk [vmem:[#allocation2 + $0x148] sm:$0xff] %vm523, %v726
  %736 = vst.msk [vmem:[#allocation2 + $0x150] sm:$0xff] %vm521, %v728
  %737 = vst.msk [vmem:[#allocation2 + $0x158] sm:$0xff] %vm523, %v728
  %v738 = vld [vmem:[%s505] sm:$0xff]
  %v739 = vld [vmem:[%s505 + $0x10] sm:$0xff]
  %v740 = vld [vmem:[%s505 + $0x20] sm:$0x3f]
  %744 = vrot.lane.b32.xlu0 %v738, 112
  %v745 = vpop.permute.xlu0 %744
  %746 = vrot.lane.b32.xlu0 %v739, 112
  %v747 = vpop.permute.xlu0 %746
  %748 = vrot.lane.b32.xlu0 %v740, 112
  %v749 = vpop.permute.xlu0 %748
  %753 = vst.msk [vmem:[#allocation2 + $0x160] sm:$0xff] %vm521, %v745
  %754 = vst.msk [vmem:[#allocation2 + $0x168] sm:$0xff] %vm523, %v745
  %755 = vst.msk [vmem:[#allocation2 + $0x170] sm:$0xff] %vm521, %v747
  %756 = vst.msk [vmem:[#allocation2 + $0x178] sm:$0xff] %vm523, %v747
  %757 = vst.msk [vmem:[#allocation2 + $0x180] sm:$0x3f] %vm527, %v749
  %758 = vst.msk [vmem:[#allocation2 + $0x188] sm:$0x3f] %vm529, %v749
  %v759 = vld [vmem:[%s505] sm:$0xff]
  %v760 = vld [vmem:[%s505 + $0x8] sm:$0xff]
  %v761 = vld [vmem:[%s505 + $0x10] sm:$0xff]
  %v762 = vld [vmem:[%s505 + $0x18] sm:$0xff]
  %v763 = vld [vmem:[%s505 + $0x20] sm:$0x3f]
  %v764 = vld [vmem:[%s505 + $0x28] sm:$0x3f]
  %v771 = vrot.slane %v759, 2
  %v772 = vrot.slane %v760, 2
  %v773 = vrot.slane %v761, 2
  %v774 = vsel %vm31, %v771, %v773
  %v775 = vrot.slane %v762, 2
  %v776 = vsel %vm31, %v772, %v775
  %v777 = vrot.slane %v763, 2
  %v778 = vsel %vm31, %v773, %v777
  %v779 = vrot.slane %v764, 2
  %v780 = vsel %vm31, %v775, %v779
  %781 = vrot.lane.b32.xlu0 %v771, 111
  %v782 = vpop.permute.xlu0 %781
  %783 = vrot.lane.b32.xlu0 %v772, 111
  %v784 = vpop.permute.xlu0 %783
  %785 = vrot.lane.b32.xlu0 %v774, 111
  %v786 = vpop.permute.xlu0 %785
  %787 = vrot.lane.b32.xlu0 %v776, 111
  %v788 = vpop.permute.xlu0 %787
  %789 = vrot.lane.b32.xlu0 %v778, 111
  %v790 = vpop.permute.xlu0 %789
  %791 = vrot.lane.b32.xlu0 %v780, 111
  %v792 = vpop.permute.xlu0 %791
  %793 = vrot.lane.b32.xlu0 %v777, 111
  %v794 = vpop.permute.xlu0 %793
  %795 = vrot.lane.b32.xlu0 %v779, 111
  %v796 = vpop.permute.xlu0 %795
  %vm797 = vcmask 908288
  %v798 = vsel %vm797, %v782, %v784
  %v799 = vsel %vm797, %v786, %v788
  %v800 = vsel %vm797, %v790, %v792
  %v801 = vsel %vm797, %v794, %v796
  %810 = vst.msk [vmem:[#allocation2 + $0x180] sm:$0xc0] %vm554, %v782
  %811 = vst.msk [vmem:[#allocation2 + $0x188] sm:$0xc0] %vm556, %v798
  %812 = vst.msk [vmem:[#allocation2 + $0x190] sm:$0xff] %vm521, %v786
  %813 = vst.msk [vmem:[#allocation2 + $0x198] sm:$0xff] %vm523, %v799
  %814 = vst.msk [vmem:[#allocation2 + $0x1a0] sm:$0xff] %vm521, %v790
  %815 = vst.msk [vmem:[#allocation2 + $0x1a8] sm:$0xff] %vm523, %v800
  %816 = vst.msk [vmem:[#allocation2 + $0x1b0] sm:$0xf] %vm562, %v794
  %817 = vst.msk [vmem:[#allocation2 + $0x1b8] sm:$0xf] %vm564, %v801
  %v818 = vld [vmem:[%s505] sm:$0xff]
  %v819 = vld [vmem:[%s505 + $0x8] sm:$0xff]
  %v820 = vld [vmem:[%s505 + $0x10] sm:$0xff]
  %v821 = vld [vmem:[%s505 + $0x18] sm:$0xff]
  %v822 = vld [vmem:[%s505 + $0x20] sm:$0x3f]
  %v823 = vld [vmem:[%s505 + $0x28] sm:$0x3f]
  %v830 = vrot.slane %v818, 4
  %v831 = vrot.slane %v819, 4
  %v832 = vrot.slane %v820, 4
  %v833 = vsel %vm61, %v830, %v832
  %v834 = vrot.slane %v821, 4
  %v835 = vsel %vm61, %v831, %v834
  %v836 = vrot.slane %v822, 4
  %v837 = vsel %vm61, %v832, %v836
  %v838 = vrot.slane %v823, 4
  %v839 = vsel %vm61, %v834, %v838
  %840 = vrot.lane.b32.xlu0 %v830, 110
  %v841 = vpop.permute.xlu0 %840
  %842 = vrot.lane.b32.xlu0 %v831, 110
  %v843 = vpop.permute.xlu0 %842
  %844 = vrot.lane.b32.xlu0 %v833, 110
  %v845 = vpop.permute.xlu0 %844
  %846 = vrot.lane.b32.xlu0 %v835, 110
  %v847 = vpop.permute.xlu0 %846
  %848 = vrot.lane.b32.xlu0 %v837, 110
  %v849 = vpop.permute.xlu0 %848
  %850 = vrot.lane.b32.xlu0 %v839, 110
  %v851 = vpop.permute.xlu0 %850
  %852 = vrot.lane.b32.xlu0 %v836, 110
  %v853 = vpop.permute.xlu0 %852
  %854 = vrot.lane.b32.xlu0 %v838, 110
  %v855 = vpop.permute.xlu0 %854
  %vm856 = vcmask 900096
  %v857 = vsel %vm856, %v841, %v843
  %v858 = vsel %vm856, %v845, %v847
  %v859 = vsel %vm856, %v849, %v851
  %v860 = vsel %vm856, %v853, %v855
  %869 = vst.msk [vmem:[#allocation2 + $0x1b0] sm:$0xf0] %vm589, %v841
  %870 = vst.msk [vmem:[#allocation2 + $0x1b8] sm:$0xf0] %vm591, %v857
  %871 = vst.msk [vmem:[#allocation2 + $0x1c0] sm:$0xff] %vm521, %v845
  %872 = vst.msk [vmem:[#allocation2 + $0x1c8] sm:$0xff] %vm523, %v858
  %873 = vst.msk [vmem:[#allocation2 + $0x1d0] sm:$0xff] %vm521, %v849
  %874 = vst.msk [vmem:[#allocation2 + $0x1d8] sm:$0xff] %vm523, %v859
  %875 = vst.msk [vmem:[#allocation2 + $0x1e0] sm:$0x3] %vm597, %v853
  %876 = vst.msk [vmem:[#allocation2 + $0x1e8] sm:$0x3] %vm599, %v860
  %v877 = vld [vmem:[%s505] sm:$0xff]
  %v878 = vld [vmem:[%s505 + $0x8] sm:$0xff]
  %v879 = vld [vmem:[%s505 + $0x10] sm:$0xff]
  %v880 = vld [vmem:[%s505 + $0x18] sm:$0xff]
  %v881 = vld [vmem:[%s505 + $0x20] sm:$0x3f]
  %v882 = vld [vmem:[%s505 + $0x28] sm:$0x3f]
  %v889 = vrot.slane %v877, 6
  %v890 = vrot.slane %v878, 6
  %v891 = vrot.slane %v879, 6
  %v892 = vsel %vm91, %v889, %v891
  %v893 = vrot.slane %v880, 6
  %v894 = vsel %vm91, %v890, %v893
  %v895 = vrot.slane %v881, 6
  %v896 = vsel %vm91, %v891, %v895
  %v897 = vrot.slane %v882, 6
  %v898 = vsel %vm91, %v893, %v897
  %899 = vrot.lane.b32.xlu0 %v889, 109
  %v900 = vpop.permute.xlu0 %899
  %901 = vrot.lane.b32.xlu0 %v890, 109
  %v902 = vpop.permute.xlu0 %901
  %903 = vrot.lane.b32.xlu0 %v892, 109
  %v904 = vpop.permute.xlu0 %903
  %905 = vrot.lane.b32.xlu0 %v894, 109
  %v906 = vpop.permute.xlu0 %905
  %907 = vrot.lane.b32.xlu0 %v896, 109
  %v908 = vpop.permute.xlu0 %907
  %909 = vrot.lane.b32.xlu0 %v898, 109
  %v910 = vpop.permute.xlu0 %909
  %vm911 = vcmask 891904
  %v912 = vsel %vm911, %v900, %v902
  %v913 = vsel %vm911, %v904, %v906
  %v914 = vsel %vm911, %v908, %v910
  %921 = vst.msk [vmem:[#allocation2 + $0x1e0] sm:$0xfc] %vm621, %v900
  %922 = vst.msk [vmem:[#allocation2 + $0x1e8] sm:$0xfc] %vm623, %v912
  %923 = vst.msk [vmem:[#allocation2 + $0x1f0] sm:$0xff] %vm521, %v904
  %924 = vst.msk [vmem:[#allocation2 + $0x1f8] sm:$0xff] %vm523, %v913
  %925 = vst.msk [vmem:[#allocation2 + $0x200] sm:$0xff] %vm521, %v908
  %926 = vst.msk [vmem:[#allocation2 + $0x208] sm:$0xff] %vm523, %v914
  %v927 = vld [vmem:[%s505] sm:$0xff]
  %v928 = vld [vmem:[%s505 + $0x8] sm:$0xff]
  %v929 = vld [vmem:[%s505 + $0x10] sm:$0xff]
  %v930 = vld [vmem:[%s505 + $0x18] sm:$0xff]
  %v931 = vld [vmem:[%s505 + $0x20] sm:$0x3f]
  %v932 = vld [vmem:[%s505 + $0x28] sm:$0x3f]
  %939 = vrot.lane.b32.xlu0 %v927, 108
  %v940 = vpop.permute.xlu0 %939
  %941 = vrot.lane.b32.xlu0 %v928, 108
  %v942 = vpop.permute.xlu0 %941
  %943 = vrot.lane.b32.xlu0 %v929, 108
  %v944 = vpop.permute.xlu0 %943
  %945 = vrot.lane.b32.xlu0 %v930, 108
  %v946 = vpop.permute.xlu0 %945
  %947 = vrot.lane.b32.xlu0 %v931, 108
  %v948 = vpop.permute.xlu0 %947
  %949 = vrot.lane.b32.xlu0 %v932, 108
  %v950 = vpop.permute.xlu0 %949
  %vm951 = vcmask 883712
  %v952 = vsel %vm951, %v940, %v942
  %v953 = vsel %vm951, %v944, %v946
  %v954 = vsel %vm951, %v948, %v950
  %961 = vst.msk [vmem:[#allocation2 + $0x210] sm:$0xff] %vm521, %v940
  %962 = vst.msk [vmem:[#allocation2 + $0x218] sm:$0xff] %vm523, %v952
  %963 = vst.msk [vmem:[#allocation2 + $0x220] sm:$0xff] %vm521, %v944
  %964 = vst.msk [vmem:[#allocation2 + $0x228] sm:$0xff] %vm523, %v953
  %965 = vst.msk [vmem:[#allocation2 + $0x230] sm:$0x3f] %vm527, %v948
  %966 = vst.msk [vmem:[#allocation2 + $0x238] sm:$0x3f] %vm529, %v954
  %v967 = vld [vmem:[%s505] sm:$0xff]
  %v968 = vld [vmem:[%s505 + $0x8] sm:$0xff]
  %v969 = vld [vmem:[%s505 + $0x10] sm:$0xff]
  %v970 = vld [vmem:[%s505 + $0x18] sm:$0xff]
  %v971 = vld [vmem:[%s505 + $0x20] sm:$0x3f]
  %v972 = vld [vmem:[%s505 + $0x28] sm:$0x3f]
  %v979 = vrot.slane %v967, 2
  %v980 = vrot.slane %v968, 2
  %v981 = vrot.slane %v969, 2
  %v982 = vsel %vm31, %v979, %v981
  %v983 = vrot.slane %v970, 2
  %v984 = vsel %vm31, %v980, %v983
  %v985 = vrot.slane %v971, 2
  %v986 = vsel %vm31, %v981, %v985
  %v987 = vrot.slane %v972, 2
  %v988 = vsel %vm31, %v983, %v987
  %989 = vrot.lane.b32.xlu0 %v979, 107
  %v990 = vpop.permute.xlu0 %989
  %991 = vrot.lane.b32.xlu0 %v980, 107
  %v992 = vpop.permute.xlu0 %991
  %993 = vrot.lane.b32.xlu0 %v982, 107
  %v994 = vpop.permute.xlu0 %993
  %995 = vrot.lane.b32.xlu0 %v984, 107
  %v996 = vpop.permute.xlu0 %995
  %997 = vrot.lane.b32.xlu0 %v986, 107
  %v998 = vpop.permute.xlu0 %997
  %999 = vrot.lane.b32.xlu0 %v988, 107
  %v1000 = vpop.permute.xlu0 %999
  %1001 = vrot.lane.b32.xlu0 %v985, 107
  %v1002 = vpop.permute.xlu0 %1001
  %1003 = vrot.lane.b32.xlu0 %v987, 107
  %v1004 = vpop.permute.xlu0 %1003
  %vm1005 = vcmask 875520
  %v1006 = vsel %vm1005, %v990, %v992
  %v1007 = vsel %vm1005, %v994, %v996
  %v1008 = vsel %vm1005, %v998, %v1000
  %v1009 = vsel %vm1005, %v1002, %v1004
  %1018 = vst.msk [vmem:[#allocation2 + $0x230] sm:$0xc0] %vm554, %v990
  %1019 = vst.msk [vmem:[#allocation2 + $0x238] sm:$0xc0] %vm556, %v1006
  %1020 = vst.msk [vmem:[#allocation2 + $0x240] sm:$0xff] %vm521, %v994
  %1021 = vst.msk [vmem:[#allocation2 + $0x248] sm:$0xff] %vm523, %v1007
  %1022 = vst.msk [vmem:[#allocation2 + $0x250] sm:$0xff] %vm521, %v998
  %1023 = vst.msk [vmem:[#allocation2 + $0x258] sm:$0xff] %vm523, %v1008
  %1024 = vst.msk [vmem:[#allocation2 + $0x260] sm:$0xf] %vm562, %v1002
  %1025 = vst.msk [vmem:[#allocation2 + $0x268] sm:$0xf] %vm564, %v1009
  %v1026 = vld [vmem:[%s505] sm:$0xff]
  %v1027 = vld [vmem:[%s505 + $0x8] sm:$0xff]
  %v1028 = vld [vmem:[%s505 + $0x10] sm:$0xff]
  %v1029 = vld [vmem:[%s505 + $0x18] sm:$0xff]
  %v1030 = vld [vmem:[%s505 + $0x20] sm:$0x3f]
  %v1031 = vld [vmem:[%s505 + $0x28] sm:$0x3f]
  %v1038 = vrot.slane %v1026, 4
  %v1039 = vrot.slane %v1027, 4
  %v1040 = vrot.slane %v1028, 4
  %v1041 = vsel %vm61, %v1038, %v1040
  %v1042 = vrot.slane %v1029, 4
  %v1043 = vsel %vm61, %v1039, %v1042
  %v1044 = vrot.slane %v1030, 4
  %v1045 = vsel %vm61, %v1040, %v1044
  %v1046 = vrot.slane %v1031, 4
  %v1047 = vsel %vm61, %v1042, %v1046
  %1048 = vrot.lane.b32.xlu0 %v1038, 106
  %v1049 = vpop.permute.xlu0 %1048
  %1050 = vrot.lane.b32.xlu0 %v1039, 106
  %v1051 = vpop.permute.xlu0 %1050
  %1052 = vrot.lane.b32.xlu0 %v1041, 106
  %v1053 = vpop.permute.xlu0 %1052
  %1054 = vrot.lane.b32.xlu0 %v1043, 106
  %v1055 = vpop.permute.xlu0 %1054
  %1056 = vrot.lane.b32.xlu0 %v1045, 106
  %v1057 = vpop.permute.xlu0 %1056
  %1058 = vrot.lane.b32.xlu0 %v1047, 106
  %v1059 = vpop.permute.xlu0 %1058
  %1060 = vrot.lane.b32.xlu0 %v1044, 106
  %v1061 = vpop.permute.xlu0 %1060
  %1062 = vrot.lane.b32.xlu0 %v1046, 106
  %v1063 = vpop.permute.xlu0 %1062
  %vm1064 = vcmask 867328
  %v1065 = vsel %vm1064, %v1049, %v1051
  %v1066 = vsel %vm1064, %v1053, %v1055
  %v1067 = vsel %vm1064, %v1057, %v1059
  %v1068 = vsel %vm1064, %v1061, %v1063
  %1077 = vst.msk [vmem:[#allocation2 + $0x260] sm:$0xf0] %vm589, %v1049
  %1078 = vst.msk [vmem:[#allocation2 + $0x268] sm:$0xf0] %vm591, %v1065
  %1079 = vst.msk [vmem:[#allocation2 + $0x270] sm:$0xff] %vm521, %v1053
  %1080 = vst.msk [vmem:[#allocation2 + $0x278] sm:$0xff] %vm523, %v1066
  %1081 = vst.msk [vmem:[#allocation2 + $0x280] sm:$0xff] %vm521, %v1057
  %1082 = vst.msk [vmem:[#allocation2 + $0x288] sm:$0xff] %vm523, %v1067
  %1083 = vst.msk [vmem:[#allocation2 + $0x290] sm:$0x3] %vm597, %v1061
  %1084 = vst.msk [vmem:[#allocation2 + $0x298] sm:$0x3] %vm599, %v1068
  %v1085 = vld [vmem:[%s1] sm:$0xff]
  %v1086 = vld [vmem:[%s1 + $0x8] sm:$0xff]
  %v1087 = vld [vmem:[%s1 + $0x10] sm:$0xff]
  %v1088 = vld [vmem:[%s1 + $0x18] sm:$0xff]
  %v1089 = vld [vmem:[%s1 + $0x20] sm:$0xff]
  %v1090 = vld [vmem:[%s1 + $0x28] sm:$0xff]
  %v1091 = vld [vmem:[%s1 + $0x30] sm:$0xff]
  %v1092 = vld [vmem:[%s1 + $0x38] sm:$0xff]
  %v1093 = vld [vmem:[%s1 + $0x40] sm:$0xff]
  %v1094 = vld [vmem:[%s1 + $0x48] sm:$0xff]
  %v1095 = vld [vmem:[%s1 + $0x50] sm:$0xff]
  %v1096 = vld [vmem:[%s1 + $0x58] sm:$0xff]
  %v1097 = vld [vmem:[%s1 + $0x60] sm:$0xff]
  %v1098 = vld [vmem:[%s1 + $0x68] sm:$0xff]
  %v1099 = vld [vmem:[%s1 + $0x70] sm:$0xff]
  %v1100 = vld [vmem:[#allocation2] sm:$0xff]
  %v1101 = vld [vmem:[#allocation2 + $0x8] sm:$0xff]
  %v1102 = vld [vmem:[#allocation2 + $0x10] sm:$0xff]
  %v1103 = vld [vmem:[#allocation2 + $0x18] sm:$0xff]
  %v1104 = vld [vmem:[#allocation2 + $0x20] sm:$0xff]
  %v1105 = vld [vmem:[#allocation2 + $0x28] sm:$0xff]
  %v1106 = vld [vmem:[#allocation2 + $0x30] sm:$0xff]
  %v1107 = vld [vmem:[#allocation2 + $0x38] sm:$0xff]
  %v1108 = vld [vmem:[#allocation2 + $0x40] sm:$0xff]
  %v1109 = vld [vmem:[#allocation2 + $0x48] sm:$0xff]
  %v1110 = vld [vmem:[#allocation2 + $0x50] sm:$0xff]
  %v1111 = vld [vmem:[#allocation2 + $0x58] sm:$0xff]
  %v1112 = vld [vmem:[#allocation2 + $0x60] sm:$0xff]
  %v1113 = vld [vmem:[#allocation2 + $0x68] sm:$0xff]
  %v1114 = vld [vmem:[#allocation2 + $0x70] sm:$0xff]
  %v1115 = vld [vmem:[#allocation2 + $0x78] sm:$0xff]
  %v1116 = vld [vmem:[#allocation2 + $0x80] sm:$0xff]
  %v1117 = vld [vmem:[#allocation2 + $0x88] sm:$0xff]
  %v1118 = vld [vmem:[#allocation2 + $0x90] sm:$0xff]
  %v1119 = vld [vmem:[#allocation2 + $0x98] sm:$0xff]
  %v1120 = vld [vmem:[#allocation2 + $0xa0] sm:$0xff]
  %v1121 = vld [vmem:[#allocation2 + $0xa8] sm:$0xff]
  %v1122 = vld [vmem:[#allocation2 + $0xb0] sm:$0xff]
  %v1123 = vld [vmem:[#allocation2 + $0xb8] sm:$0xff]
  %v1124 = vld [vmem:[#allocation2 + $0xc0] sm:$0xff]
  %v1125 = vld [vmem:[#allocation2 + $0xc8] sm:$0xff]
  %v1126 = vld [vmem:[#allocation2 + $0xd0] sm:$0xff]
  %v1127 = vld [vmem:[#allocation2 + $0xd8] sm:$0xff]
  %v1128 = vld [vmem:[#allocation2 + $0xe0] sm:$0xff]
  %v1129 = vld [vmem:[#allocation2 + $0xe8] sm:$0xff]
  %v1130 = vld [vmem:[#allocation2 + $0xf0] sm:$0xff]
  %v1131 = vld [vmem:[#allocation2 + $0xf8] sm:$0xff]
  %v1132 = vld [vmem:[#allocation2 + $0x100] sm:$0xff]
  %v1133 = vld [vmem:[#allocation2 + $0x108] sm:$0xff]
  %v1134 = vld [vmem:[#allocation2 + $0x110] sm:$0xff]
  %v1135 = vld [vmem:[#allocation2 + $0x118] sm:$0xff]
  %v1136 = vld [vmem:[#allocation2 + $0x120] sm:$0xff]
  %v1137 = vld [vmem:[#allocation2 + $0x128] sm:$0xff]
  %v1138 = vld [vmem:[#allocation2 + $0x130] sm:$0xff]
  %v1139 = vld [vmem:[#allocation2 + $0x138] sm:$0xff]
  %v1140 = vld [vmem:[#allocation2 + $0x140] sm:$0xff]
  %v1141 = vld [vmem:[#allocation2 + $0x148] sm:$0xff]
  %v1142 = vld [vmem:[#allocation2 + $0x150] sm:$0xff]
  %v1143 = vld [vmem:[#allocation2 + $0x158] sm:$0xff]
  %v1144 = vld [vmem:[#allocation2 + $0x160] sm:$0xff]
  %v1145 = vld [vmem:[#allocation2 + $0x168] sm:$0xff]
  %v1146 = vld [vmem:[#allocation2 + $0x170] sm:$0xff]
  %v1147 = vld [vmem:[#allocation2 + $0x178] sm:$0xff]
  %v1148 = vld [vmem:[#allocation2 + $0x180] sm:$0xff]
  %v1149 = vld [vmem:[#allocation2 + $0x188] sm:$0xff]
  %v1150 = vld [vmem:[#allocation2 + $0x190] sm:$0xff]
  %v1151 = vld [vmem:[#allocation2 + $0x198] sm:$0xff]
  %v1152 = vld [vmem:[#allocation2 + $0x1a0] sm:$0xff]
  %v1153 = vld [vmem:[#allocation2 + $0x1a8] sm:$0xff]
  %v1154 = vld [vmem:[#allocation2 + $0x1b0] sm:$0xff]
  %v1155 = vld [vmem:[#allocation2 + $0x1b8] sm:$0xff]
  %v1156 = vld [vmem:[#allocation2 + $0x1c0] sm:$0xff]
  %v1157 = vld [vmem:[#allocation2 + $0x1c8] sm:$0xff]
  %v1158 = vld [vmem:[#allocation2 + $0x1d0] sm:$0xff]
  %v1159 = vld [vmem:[#allocation2 + $0x1d8] sm:$0xff]
  %v1160 = vld [vmem:[#allocation2 + $0x1e0] sm:$0xff]
  %v1161 = vld [vmem:[#allocation2 + $0x1e8] sm:$0xff]
  %v1162 = vld [vmem:[#allocation2 + $0x1f0] sm:$0xff]
  %v1163 = vld [vmem:[#allocation2 + $0x1f8] sm:$0xff]
  %v1164 = vld [vmem:[#allocation2 + $0x200] sm:$0xff]
  %v1165 = vld [vmem:[#allocation2 + $0x208] sm:$0xff]
  %v1166 = vld [vmem:[#allocation2 + $0x210] sm:$0xff]
  %v1167 = vld [vmem:[#allocation2 + $0x218] sm:$0xff]
  %v1168 = vld [vmem:[#allocation2 + $0x220] sm:$0xff]
  %v1169 = vld [vmem:[#allocation2 + $0x228] sm:$0xff]
  %v1170 = vld [vmem:[#allocation2 + $0x230] sm:$0xff]
  %v1171 = vld [vmem:[#allocation2 + $0x238] sm:$0xff]
  %v1172 = vld [vmem:[#allocation2 + $0x240] sm:$0xff]
  %v1173 = vld [vmem:[#allocation2 + $0x248] sm:$0xff]
  %v1174 = vld [vmem:[#allocation2 + $0x250] sm:$0xff]
  %v1175 = vld [vmem:[#allocation2 + $0x258] sm:$0xff]
  %v1176 = vld [vmem:[#allocation2 + $0x260] sm:$0xff]
  %v1177 = vld [vmem:[#allocation2 + $0x268] sm:$0xff]
  %v1178 = vld [vmem:[#allocation2 + $0x270] sm:$0xff]
  %v1179 = vld [vmem:[#allocation2 + $0x278] sm:$0xff]
  %v1180 = vld [vmem:[#allocation2 + $0x280] sm:$0xff]
  %v1181 = vld [vmem:[#allocation2 + $0x288] sm:$0xff]
  %v1182 = vld [vmem:[#allocation2 + $0x290] sm:$0x3]
  %v1183 = vld [vmem:[#allocation2 + $0x298] sm:$0x3]
  %v1184 = vld [vmem:[%s2] sm:$0xff]
  %v1185 = vld [vmem:[%s2 + $0x8] sm:$0xff]
  %v1186 = vld [vmem:[%s2 + $0x10] sm:$0xff]
  %v1187 = vld [vmem:[%s2 + $0x18] sm:$0xff]
  %v1188 = vld [vmem:[%s2 + $0x20] sm:$0xff]
  %1190 = vset.pattern.permute.xlu0 0
  %1191 = vperm.xlu0 %1190, %v1184
  %v1192 = vpop.permute.xlu0 %1191
  %1195 = vset.pattern.permute.xlu0 0
  %1196 = vperm.xlu0 %1195, %v1185
  %v1197 = vpop.permute.xlu0 %1196
  %1200 = vset.pattern.permute.xlu0 0
  %1201 = vperm.xlu0 %1200, %v1186
  %v1202 = vpop.permute.xlu0 %1201
  %1205 = vset.pattern.permute.xlu0 0
  %1206 = vperm.xlu0 %1205, %v1187
  %v1207 = vpop.permute.xlu0 %1206
  %1210 = vset.pattern.permute.xlu0 0
  %1211 = vperm.xlu0 %1210, %v1188
  %v1212 = vpop.permute.xlu0 %1211
  %vm1214 = vcmask 605184
  %v1216 = vsel %vm1214, %v1087, 0
  %v1219 = vsel %vm1214, %v1090, 0
  %v1222 = vsel %vm1214, %v1093, 0
  %v1225 = vsel %vm1214, %v1096, 0
  %v1228 = vsel %vm1214, %v1099, 0
  %v1231 = vsel %vm91, %v1182, 0
  %v1234 = vsel %vm91, %v1183, 0
  %1236 = vmatprep.subr.mxu0 %v1101
  %1237 = vmatpush1.msra.mxu0 %v1100
  %1238 = vmatprep.subr.mxu0 %v1103
  %1239 = vmatpush1.msra.mxu0 %v1102
  %1240 = vmatprep.subr.mxu0 %v1105
  %1241 = vmatpush1.msra.mxu0 %v1104
  %1242 = vmatprep.subr.mxu0 %v1107
  %1243 = vmatpush1.msra.mxu0 %v1106
  %1244 = vmatprep.subr.mxu0 %v1109
  %1245 = vmatpush1.msra.mxu0 %v1108
  %1246 = vmatprep.subr.mxu0 %v1111
  %1247 = vmatpush1.msra.mxu0 %v1110
  %1248 = vmatprep.subr.mxu0 %v1113
  %1249 = vmatpush1.msra.mxu0 %v1112
  %1250 = vmatprep.subr.mxu0 %v1115
  %1251 = vmatpush1.msra.mxu0 %v1114
  %1252 = vmatprep.subr.mxu0 %v1117
  %1253 = vmatpush1.msra.mxu0 %v1116
  %1254 = vmatprep.subr.mxu0 %v1119
  %1255 = vmatpush1.msra.mxu0 %v1118
  %1256 = vmatprep.subr.mxu0 %v1121
  %1257 = vmatpush1.msra.mxu0 %v1120
  %1258 = vmatprep.subr.mxu0 %v1123
  %1259 = vmatpush1.msra.mxu0 %v1122
  %1260 = vmatprep.subr.mxu0 %v1125
  %1261 = vmatpush1.msra.mxu0 %v1124
  %1262 = vmatprep.subr.mxu0 %v1127
  %1263 = vmatpush1.msra.mxu0 %v1126
  %1264 = vmatprep.subr.mxu0 %v1129
  %1265 = vmatpush1.msra.mxu0 %v1128
  %1266 = vmatprep.subr.mxu0 %v1131
  %1267 = vmatpush1.msra.mxu0 %v1130
  %1268 = vmatprep.subr.mxu0 %v1133
  %1269 = vmatpush1.msra.mxu0 %v1132
  %1270 = vmatprep.subr.mxu0 %v1135
  %1271 = vmatpush1.msra.mxu0 %v1134
  %1272 = vmatprep.subr.mxu0 %v1137
  %1273 = vmatpush1.msra.mxu0 %v1136
  %1274 = vmatprep.subr.mxu0 %v1139
  %1275 = vmatpush1.msra.mxu0 %v1138
  %1276 = vmatprep.subr.mxu0 %v1141
  %1277 = vmatpush1.msra.mxu0 %v1140
  %1278 = vmatprep.subr.mxu0 %v1143
  %1279 = vmatpush1.msra.mxu0 %v1142
  %1280 = vmatprep.subr.mxu0 %v1145
  %1281 = vmatpush1.msra.mxu0 %v1144
  %1282 = vmatprep.subr.mxu0 %v1147
  %1283 = vmatpush1.msra.mxu0 %v1146
  %1284 = vmatprep.subr.mxu0 %v1149
  %1285 = vmatpush1.msra.mxu0 %v1148
  %1286 = vmatprep.subr.mxu0 %v1151
  %1287 = vmatpush1.msra.mxu0 %v1150
  %1288 = vmatprep.subr.mxu0 %v1153
  %1289 = vmatpush1.msra.mxu0 %v1152
  %1290 = vmatprep.subr.mxu0 %v1155
  %1291 = vmatpush1.msra.mxu0 %v1154
  %1292 = vmatprep.subr.mxu0 %v1157
  %1293 = vmatpush1.msra.mxu0 %v1156
  %1294 = vmatprep.subr.mxu0 %v1159
  %1295 = vmatpush1.msra.mxu0 %v1158
  %1296 = vmatprep.subr.mxu0 %v1161
  %1297 = vmatpush1.msra.mxu0 %v1160
  %1298 = vmatprep.subr.mxu0 %v1163
  %1299 = vmatpush1.msra.mxu0 %v1162
  %1300 = vmatprep.mubr.f32.mxu0 %v1086
  %1301 = vmatmul.mubr.f32.gmra.mrb[0].mxu0 %v1085
  %v1302 = vpop.f32.mrb[0].mxu0
  %v1303 = vadd.f32 %v1192, %v1302
  %v1304 = vpop.f32.mrb[0].mxu0
  %v1305 = vadd.f32 %v1192, %v1304
  %1306 = vmatprep.mubr.f32.mxu0 %v1089
  %1307 = vmatmul.mubr.f32.gmra.mrb[0].mxu0 %v1088
  %v1308 = vpop.f32.mrb[0].mxu0
  %v1309 = vadd.f32 %v1197, %v1308
  %v1310 = vpop.f32.mrb[0].mxu0
  %v1311 = vadd.f32 %v1197, %v1310
  %1312 = vmatprep.mubr.f32.mxu0 %v1092
  %1313 = vmatmul.mubr.f32.gmra.mrb[0].mxu0 %v1091
  %v1314 = vpop.f32.mrb[0].mxu0
  %v1315 = vadd.f32 %v1202, %v1314
  %v1316 = vpop.f32.mrb[0].mxu0
  %v1317 = vadd.f32 %v1202, %v1316
  %1318 = vmatprep.mubr.f32.mxu0 %v1095
  %1319 = vmatmul.mubr.f32.gmra.mrb[0].mxu0 %v1094
  %v1320 = vpop.f32.mrb[0].mxu0
  %v1321 = vadd.f32 %v1207, %v1320
  %v1322 = vpop.f32.mrb[0].mxu0
  %v1323 = vadd.f32 %v1207, %v1322
  %1324 = vmatprep.mubr.f32.mxu0 %v1098
  %1325 = vmatmul.mubr.f32.gmra.mrb[0].mxu0 %v1097
  %v1326 = vpop.f32.mrb[0].mxu0
  %v1327 = vadd.f32 %v1212, %v1326
  %v1328 = vpop.f32.mrb[0].mxu0
  %v1329 = vadd.f32 %v1212, %v1328
  %1330 = vdwg.mxu0
  %1331 = vmatprep.subr.mxu0 %v1165
  %1332 = vmatpush1.msra.mxu0 %v1164
  %1333 = vmatprep.subr.mxu0 %v1167
  %1334 = vmatpush1.msra.mxu0 %v1166
  %1335 = vmatprep.subr.mxu0 %v1169
  %1336 = vmatpush1.msra.mxu0 %v1168
  %1337 = vmatprep.subr.mxu0 %v1171
  %1338 = vmatpush1.msra.mxu0 %v1170
  %1339 = vmatprep.subr.mxu0 %v1173
  %1340 = vmatpush1.msra.mxu0 %v1172
  %1341 = vmatprep.subr.mxu0 %v1175
  %1342 = vmatpush1.msra.mxu0 %v1174
  %1343 = vmatprep.subr.mxu0 %v1177
  %1344 = vmatpush1.msra.mxu0 %v1176
  %1345 = vmatprep.subr.mxu0 %v1179
  %1346 = vmatpush1.msra.mxu0 %v1178
  %1347 = vmatprep.subr.mxu0 %v1181
  %1348 = vmatpush1.msra.mxu0 %v1180
  %1349 = vmatprep.subr.mxu0 %v1234
  %1350 = vmatpush1.msra.mxu0 %v1231
  %1351 = vmatprep.subr.mxu0 0.0
  %1352 = vmatpush1.msra.mxu0 0.0
  %1353 = vmatprep.subr.mxu0 0.0
  %1354 = vmatpush1.msra.mxu0 0.0
  %1355 = vmatprep.subr.mxu0 0.0
  %1356 = vmatpush1.msra.mxu0 0.0
  %1357 = vmatprep.subr.mxu0 0.0
  %1358 = vmatpush1.msra.mxu0 0.0
  %1359 = vmatprep.subr.mxu0 0.0
  %1360 = vmatpush1.msra.mxu0 0.0
  %1361 = vmatprep.subr.mxu0 0.0
  %1362 = vmatpush1.msra.mxu0 0.0
  %1363 = vmatprep.subr.mxu0 0.0
  %1364 = vmatpush1.msra.mxu0 0.0
  %1365 = vmatprep.subr.mxu0 0.0
  %1366 = vmatpush1.msra.mxu0 0.0
  %1367 = vmatprep.subr.mxu0 0.0
  %1368 = vmatpush1.msra.mxu0 0.0
  %1369 = vmatprep.subr.mxu0 0.0
  %1370 = vmatpush1.msra.mxu0 0.0
  %1371 = vmatprep.subr.mxu0 0.0
  %1372 = vmatpush1.msra.mxu0 0.0
  %1373 = vmatprep.subr.mxu0 0.0
  %1374 = vmatpush1.msra.mxu0 0.0
  %1375 = vmatprep.subr.mxu0 0.0
  %1376 = vmatpush1.msra.mxu0 0.0
  %1377 = vmatprep.subr.mxu0 0.0
  %1378 = vmatpush1.msra.mxu0 0.0
  %1379 = vmatprep.subr.mxu0 0.0
  %1380 = vmatpush1.msra.mxu0 0.0
  %1381 = vmatprep.subr.mxu0 0.0
  %1382 = vmatpush1.msra.mxu0 0.0
  %1383 = vmatprep.subr.mxu0 0.0
  %1384 = vmatpush1.msra.mxu0 0.0
  %1385 = vmatprep.subr.mxu0 0.0
  %1386 = vmatpush1.msra.mxu0 0.0
  %1387 = vmatprep.subr.mxu0 0.0
  %1388 = vmatpush1.msra.mxu0 0.0
  %1389 = vmatprep.subr.mxu0 0.0
  %1390 = vmatpush1.msra.mxu0 0.0
  %1391 = vmatprep.subr.mxu0 0.0
  %1392 = vmatpush1.msra.mxu0 0.0
  %1393 = vmatprep.subr.mxu0 0.0
  %1394 = vmatpush1.msra.mxu0 0.0
  %1395 = vmatprep.mubr.f32.mxu0 0.0
  %1396 = vmatmul.mubr.f32.gmra.mrb[0].mxu0 %v1216
  %v1397 = vpop.f32.mrb[0].mxu0
  %v1398 = vadd.f32 %v1303, %v1397
  %v1399 = vpop.f32.mrb[0].mxu0
  %v1400 = vadd.f32 %v1305, %v1399
  %1401 = vmatprep.mubr.f32.mxu0 0.0
  %1402 = vmatmul.mubr.f32.gmra.mrb[0].mxu0 %v1219
  %v1403 = vpop.f32.mrb[0].mxu0
  %v1404 = vadd.f32 %v1309, %v1403
  %v1405 = vpop.f32.mrb[0].mxu0
  %v1406 = vadd.f32 %v1311, %v1405
  %1407 = vmatprep.mubr.f32.mxu0 0.0
  %1408 = vmatmul.mubr.f32.gmra.mrb[0].mxu0 %v1222
  %v1409 = vpop.f32.mrb[0].mxu0
  %v1410 = vadd.f32 %v1315, %v1409
  %v1411 = vpop.f32.mrb[0].mxu0
  %v1412 = vadd.f32 %v1317, %v1411
  %1413 = vmatprep.mubr.f32.mxu0 0.0
  %1414 = vmatmul.mubr.f32.gmra.mrb[0].mxu0 %v1225
  %v1415 = vpop.f32.mrb[0].mxu0
  %v1416 = vadd.f32 %v1321, %v1415
  %v1417 = vpop.f32.mrb[0].mxu0
  %v1418 = vadd.f32 %v1323, %v1417
  %1419 = vmatprep.mubr.f32.mxu0 0.0
  %1420 = vmatmul.mubr.f32.gmra.mrb[0].mxu0 %v1228
  %v1421 = vpop.f32.mrb[0].mxu0
  %v1422 = vadd.f32 %v1327, %v1421
  %v1423 = vpop.f32.mrb[0].mxu0
  %v1424 = vadd.f32 %v1329, %v1423
  %1425 = vdwg.mxu0
  %v1426 = vmul.f32 %v1398, %v1398
  %v1427 = vmul.f32 %v1400, %v1400
  %v1428 = vmul.f32 %v1404, %v1404
  %v1429 = vmul.f32 %v1406, %v1406
  %v1430 = vmul.f32 %v1410, %v1410
  %v1431 = vmul.f32 %v1412, %v1412
  %v1432 = vmul.f32 %v1416, %v1416
  %v1433 = vmul.f32 %v1418, %v1418
  %v1434 = vmul.f32 %v1422, %v1422
  %v1435 = vmul.f32 %v1424, %v1424
  %v1436 = vld [vmem:[%s3] sm:$0xff]
  %v1437 = vld [vmem:[%s3 + $0x8] sm:$0xff]
  %v1438 = vld [vmem:[%s3 + $0x10] sm:$0xff]
  %v1439 = vld [vmem:[%s3 + $0x18] sm:$0xff]
  %v1440 = vld [vmem:[%s3 + $0x20] sm:$0xff]
  %v1441 = vld [vmem:[%s3 + $0x28] sm:$0xff]
  %v1442 = vld [vmem:[%s3 + $0x30] sm:$0xff]
  %v1443 = vld [vmem:[%s3 + $0x38] sm:$0xff]
  %v1444 = vld [vmem:[%s3 + $0x40] sm:$0xff]
  %v1445 = vld [vmem:[%s3 + $0x48] sm:$0xff]
  %v1446 = vld [vmem:[%s3 + $0x50] sm:$0xff]
  %v1447 = vld [vmem:[%s3 + $0x58] sm:$0xff]
  %v1448 = vld [vmem:[%s3 + $0x60] sm:$0xff]
  %v1449 = vld [vmem:[%s3 + $0x68] sm:$0xff]
  %v1450 = vld [vmem:[%s3 + $0x70] sm:$0xff]
  %v1451 = vld [vmem:[%s3 + $0x78] sm:$0xff]
  %v1452 = vld [vmem:[%s3 + $0x80] sm:$0xff]
  %v1453 = vld [vmem:[%s3 + $0x88] sm:$0xff]
  %v1454 = vld [vmem:[%s3 + $0x90] sm:$0xff]
  %v1455 = vld [vmem:[%s3 + $0x98] sm:$0xff]
  %v1456 = vld [vmem:[%s3 + $0xa0] sm:$0xff]
  %v1457 = vld [vmem:[%s3 + $0xa8] sm:$0xff]
  %v1458 = vld [vmem:[%s3 + $0xb0] sm:$0xff]
  %v1459 = vld [vmem:[%s3 + $0xb8] sm:$0xff]
  %v1460 = vld [vmem:[%s3 + $0xc0] sm:$0xff]
  %v1461 = vld [vmem:[%s3 + $0xc8] sm:$0xff]
  %v1462 = vld [vmem:[%s3 + $0xd0] sm:$0xff]
  %v1463 = vld [vmem:[%s3 + $0xd8] sm:$0xff]
  %v1464 = vld [vmem:[%s3 + $0xe0] sm:$0xff]
  %v1465 = vld [vmem:[%s3 + $0xe8] sm:$0xff]
  %v1467 = vsel %vm523, %v1427, 0
  %v1470 = vsel %vm523, %v1429, 0
  %v1473 = vsel %vm523, %v1431, 0
  %v1476 = vsel %vm523, %v1433, 0
  %v1479 = vsel %vm523, %v1435, 0
  %1481 = vmatprep.subr.mxu0 0.0
  %1482 = vmatpush1.msra.mxu0 %v1436
  %1483 = vmatprep.subr.mxu0 0.0
  %1484 = vmatpush1.msra.mxu0 %v1437
  %1485 = vmatprep.subr.mxu0 0.0
  %1486 = vmatpush1.msra.mxu0 %v1438
  %1487 = vmatprep.subr.mxu0 0.0
  %1488 = vmatpush1.msra.mxu0 %v1439
  %1489 = vmatprep.subr.mxu0 0.0
  %1490 = vmatpush1.msra.mxu0 %v1440
  %1491 = vmatprep.subr.mxu0 0.0
  %1492 = vmatpush1.msra.mxu0 %v1441
  %1493 = vmatprep.subr.mxu0 0.0
  %1494 = vmatpush1.msra.mxu0 %v1442
  %1495 = vmatprep.subr.mxu0 0.0
  %1496 = vmatpush1.msra.mxu0 %v1443
  %1497 = vmatprep.subr.mxu0 0.0
  %1498 = vmatpush1.msra.mxu0 %v1444
  %1499 = vmatprep.subr.mxu0 0.0
  %1500 = vmatpush1.msra.mxu0 %v1445
  %1501 = vmatprep.subr.mxu0 0.0
  %1502 = vmatpush1.msra.mxu0 %v1446
  %1503 = vmatprep.subr.mxu0 0.0
  %1504 = vmatpush1.msra.mxu0 %v1447
  %1505 = vmatprep.subr.mxu0 0.0
  %1506 = vmatpush1.msra.mxu0 %v1448
  %1507 = vmatprep.subr.mxu0 0.0
  %1508 = vmatpush1.msra.mxu0 %v1449
  %1509 = vmatprep.subr.mxu0 0.0
  %1510 = vmatpush1.msra.mxu0 %v1450
  %1511 = vmatprep.subr.mxu0 0.0
  %1512 = vmatpush1.msra.mxu0 %v1451
  %1513 = vmatprep.subr.mxu0 0.0
  %1514 = vmatpush1.msra.mxu0 %v1452
  %1515 = vmatprep.subr.mxu0 0.0
  %1516 = vmatpush1.msra.mxu0 %v1453
  %1517 = vmatprep.subr.mxu0 0.0
  %1518 = vmatpush1.msra.mxu0 %v1454
  %1519 = vmatprep.subr.mxu0 0.0
  %1520 = vmatpush1.msra.mxu0 %v1455
  %1521 = vmatprep.subr.mxu0 0.0
  %1522 = vmatpush1.msra.mxu0 %v1456
  %1523 = vmatprep.subr.mxu0 0.0
  %1524 = vmatpush1.msra.mxu0 %v1457
  %1525 = vmatprep.subr.mxu0 0.0
  %1526 = vmatpush1.msra.mxu0 %v1458
  %1527 = vmatprep.subr.mxu0 0.0
  %1528 = vmatpush1.msra.mxu0 %v1459
  %1529 = vmatprep.subr.mxu0 0.0
  %1530 = vmatpush1.msra.mxu0 %v1460
  %1531 = vmatprep.subr.mxu0 0.0
  %1532 = vmatpush1.msra.mxu0 %v1461
  %1533 = vmatprep.subr.mxu0 0.0
  %1534 = vmatpush1.msra.mxu0 %v1462
  %1535 = vmatprep.subr.mxu0 0.0
  %1536 = vmatpush1.msra.mxu0 %v1463
  %1537 = vmatprep.subr.mxu0 0.0
  %1538 = vmatpush1.msra.mxu0 %v1464
  %1539 = vmatprep.subr.mxu0 0.0
  %1540 = vmatpush1.msra.mxu0 %v1465
  %1541 = vmatprep.subr.mxu0 0.0
  %1542 = vmatpush1.msra.mxu0 0.0
  %1543 = vmatprep.subr.mxu0 0.0
  %1544 = vmatpush1.msra.mxu0 0.0
  %1545 = vmatprep.mubr.f32.mxu0 %v1467
  %1546 = vmatmul.mubr.f32.gmra.mrb[0].mxu0 %v1426
  %v1547 = vpop.f32.mrb[0].mxu0
  %v1548 = vadd.f32 0.0, %v1547
  %v1549 = vpop.f32.mrb[0].mxu0
  %1550 = vmatprep.mubr.f32.mxu0 %v1470
  %1551 = vmatmul.mubr.f32.gmra.mrb[0].mxu0 %v1428
  %v1552 = vpop.f32.mrb[0].mxu0
  %v1553 = vadd.f32 0.0, %v1552
  %v1554 = vpop.f32.mrb[0].mxu0
  %1555 = vmatprep.mubr.f32.mxu0 %v1473
  %1556 = vmatmul.mubr.f32.gmra.mrb[0].mxu0 %v1430
  %v1557 = vpop.f32.mrb[0].mxu0
  %v1558 = vadd.f32 0.0, %v1557
  %v1559 = vpop.f32.mrb[0].mxu0
  %1560 = vmatprep.mubr.f32.mxu0 %v1476
  %1561 = vmatmul.mubr.f32.gmra.mrb[0].mxu0 %v1432
  %v1562 = vpop.f32.mrb[0].mxu0
  %v1563 = vadd.f32 0.0, %v1562
  %v1564 = vpop.f32.mrb[0].mxu0
  %1565 = vmatprep.mubr.f32.mxu0 %v1479
  %1566 = vmatmul.mubr.f32.gmra.mrb[0].mxu0 %v1434
  %v1567 = vpop.f32.mrb[0].mxu0
  %v1568 = vadd.f32 0.0, %v1567
  %v1569 = vpop.f32.mrb[0].mxu0
  %1570 = vdwg.mxu0
  %v1571 = vlog2.pop %v1548
  %v1572 = vmul.f32 %v1571, 0.6931472
  %v1573 = vlog2.pop %v1553
  %v1574 = vmul.f32 %v1573, 0.6931472
  %v1575 = vlog2.pop %v1558
  %v1576 = vmul.f32 %v1575, 0.6931472
  %v1577 = vlog2.pop %v1563
  %v1578 = vmul.f32 %v1577, 0.6931472
  %v1579 = vlog2.pop %v1568
  %v1580 = vmul.f32 %v1579, 0.6931472
  %vm1581 = vcmask 64512
  %1582 = vst.msk [vmem:[%s4] sm:$0xff] %vm1581, %v1572
  %1583 = vst.msk [vmem:[%s4 + $0x8] sm:$0xff] %vm1581, %v1574
  %1584 = vst.msk [vmem:[%s4 + $0x10] sm:$0xff] %vm1581, %v1576
  %1585 = vst.msk [vmem:[%s4 + $0x18] sm:$0xff] %vm1581, %v1578
  %1586 = vst.msk [vmem:[%s4 + $0x20] sm:$0xff] %vm1581, %v1580
  // Predicated region
  $region18: #{simplenet_forward.1} parent=0 // pred_check
    _
  $region19: #{simplenet_forward.1} parent=0 // pred_check_branch
    %1588 = sbr.rel (0) target = $region21
  $region20: #{simplenet_forward.1} parent=0 // pred_region
    _
  $region21: #{simplenet_forward.1} parent=0 // pred_fallthru
    _
  // Predicated region
  $region22: #{simplenet_forward.1} parent=0 // pred_check
    _
  $region23: #{simplenet_forward.1} parent=0 // pred_check_branch
    %1590 = sbr.rel (0) target = $region25
  $region24: #{simplenet_forward.1} parent=0 // pred_region
    _
  $region25: #{simplenet_forward.1} parent=0 // pred_fallthru
    _

</llo_original>
